<compile_context>
chip_gen: v5e
topology: v5e:2x2
jax: 0.10.0
libtpu: 0.0.40
codegen_flags: <defaults>
</compile_context>

<pallas_src>
import functools

import jax
import jax.numpy as jnp
from jax.experimental import pallas as pl
from jax.experimental.pallas import tpu as pltpu

LANE = 128


def _round_up(x, m):
    return (x + m - 1) // m * m


def _vmem_limit_bytes():
    """~80% of physical VMEM per TensorCore (v7x ~51 MiB, v5e/v6e ~102 MiB).

    Falls back to 48 MiB, which is safe on every TPU generation.
    """
    try:
        info = pltpu.get_tpu_info()
        cap = getattr(info, "vmem_capacity_bytes", None)
        if cap:
            return int(0.80 * int(cap))
    except Exception:
        pass
    return 48 * 1024 * 1024


def _pad2d(w, rows, cols):
    r, c = w.shape
    return jnp.pad(w, ((0, rows - r), (0, cols - c)))


def _pad_bias(b, cols):
    return jnp.pad(b, (0, cols - b.shape[0])).reshape(1, -1)


# --------------------------------------------------------------------------------------
# One-time parameter preprocessing (hoisted out of the per-call hot path)
# --------------------------------------------------------------------------------------


def prepare_params(params):
    """Zero-pads every dim to a multiple of 128 lanes (exact) and lane-concatenates
    the three branches of layers 2/3 into single weight slabs. Call once, reuse."""
    feat_dim = params["lin1"][0].shape[0]
    hidden_dim = params["lin1"][0].shape[1]
    output_dim = params["lin3_node"][0].shape[1]
    fp = _round_up(feat_dim, LANE)
    hp = _round_up(hidden_dim, LANE)
    op = _round_up(output_dim, LANE)

    prep = {
        "feat_dim": feat_dim, "hidden_dim": hidden_dim, "output_dim": output_dim,
        "fp": fp, "hp": hp, "op": op,
        # layer 1: three distinct-input branches, rows padded to fp, cols to hp
        "w1a": _pad2d(params["lin1"][0], fp, hp),
        "w1b": _pad2d(params["lin1_1"][0], fp, hp),
        "w1c": _pad2d(params["lin1_2"][0], fp, hp),
        "b1a": _pad_bias(params["lin1"][1], hp),
        "b1b": _pad_bias(params["lin1_1"][1], hp),
        "b1c": _pad_bias(params["lin1_2"][1], hp),
        # layer 2: lane-concatenated [W_self | W_one | W_two], [hp, 3hp]
        "w2c": jnp.concatenate([_pad2d(params["lin2"][0], hp, hp),
                                _pad2d(params["lin2_1"][0], hp, hp),
                                _pad2d(params["lin2_2"][0], hp, hp)], axis=1),
        "b2c": jnp.concatenate([_pad_bias(params["lin2"][1], hp),
                                _pad_bias(params["lin2_1"][1], hp),
                                _pad_bias(params["lin2_2"][1], hp)], axis=1),
        # layer 3 (node path): [hp, 3op]
        "w3c": jnp.concatenate([_pad2d(params["lin3_node"][0], hp, op),
                                _pad2d(params["lin3_1_node"][0], hp, op),
                                _pad2d(params["lin3_2_node"][0], hp, op)], axis=1),
        "b3c": jnp.concatenate([_pad_bias(params["lin3_node"][1], op),
                                _pad_bias(params["lin3_1_node"][1], op),
                                _pad_bias(params["lin3_2_node"][1], op)], axis=1),
    }
    # Materialize once so later forward() calls pay no weight-prep cost.
    return {k: (jax.block_until_ready(v) if isinstance(v, jax.Array) else v)
            for k, v in prep.items()}


# --------------------------------------------------------------------------------------
# Fully fused single-call kernel (small graphs, everything VMEM-resident)
# --------------------------------------------------------------------------------------


def _fused_gcn_kernel(a1_ref, a2_ref,
                      x0_ref, x1_ref, x2_ref,
                      w1a_ref, b1a_ref, w1b_ref, b1b_ref, w1c_ref, b1c_ref,
                      w2c_ref, b2c_ref,
                      w3c_ref, b3c_ref,
                      out_ref, *, hp, op):
    f32 = jnp.float32
    dot = lambda a, b: jnp.dot(a, b, preferred_element_type=f32)
    relu = lambda v: jnp.maximum(v, 0.0)

    a1 = a1_ref[...]
    a2 = a2_ref[...]

    # ---- layer 1: three distinct input features ------------------------------------
    y0 = dot(x0_ref[...], w1a_ref[...]) + b1a_ref[...]
    y1 = dot(x1_ref[...], w1b_ref[...]) + b1b_ref[...]
    y2 = dot(x2_ref[...], w1c_ref[...]) + b1c_ref[...]
    x = relu(y0) + relu(dot(a1, y1)) + relu(dot(a2, y2))             # [N, hp]

    # ---- layer 2: shared input -> one lane-concatenated matmul ----------------------
    z = dot(x, w2c_ref[...]) + b2c_ref[...]                          # [N, 3hp]
    x = (relu(z[:, :hp])
         + relu(dot(a1, z[:, hp:2 * hp]))
         + relu(dot(a2, z[:, 2 * hp:3 * hp])))                       # [N, hp]

    # ---- layer 3 (node path): no relu ------------------------------------------------
    z = dot(x, w3c_ref[...]) + b3c_ref[...]                          # [N, 3op]
    out = (z[:, :op]
           + dot(a1, z[:, op:2 * op])
           + dot(a2, z[:, 2 * op:3 * op]))                           # [N, op]

    out_ref[...] = out.astype(out_ref.dtype)


def _forward_fused(prep, one_adj, two_adj, x0, x1, x2, vmem_limit):
    n = x0.shape[0]
    hp, op = prep["hp"], prep["op"]
    kernel = functools.partial(_fused_gcn_kernel, hp=hp, op=op)
    vmem = pl.BlockSpec(memory_space=pltpu.MemorySpace.VMEM)
    return pl.pallas_call(
        kernel,
        out_shape=jax.ShapeDtypeStruct((n, op), jnp.float32),
        in_specs=[vmem] * 15,
        out_specs=vmem,
        compiler_params=pltpu.CompilerParams(vmem_limit_bytes=vmem_limit),
    )(one_adj, two_adj, x0, x1, x2,
      prep["w1a"], prep["b1a"], prep["w1b"], prep["b1b"], prep["w1c"], prep["b1c"],
      prep["w2c"], prep["b2c"],
      prep["w3c"], prep["b3c"])


# --------------------------------------------------------------------------------------
# Row-tiled multi-call path (larger graphs; "parallel" grid -> both v7x TensorCores,
# pipelined adjacency-row DMA via BlockSpec double buffering)
# --------------------------------------------------------------------------------------


def _lin1_kernel(x0_ref, x1_ref, x2_ref,
                 w1a_ref, b1a_ref, w1b_ref, b1b_ref, w1c_ref, b1c_ref,
                 z_ref, *, hp):
    """Layer-1 per-node linear: Z = [X0 W1a + b | X1 W1b + b | X2 W1c + b]."""
    f32 = jnp.float32
    dot = lambda a, b: jnp.dot(a, b, preferred_element_type=f32)
    z_ref[:, 0 * hp:1 * hp] = (dot(x0_ref[...], w1a_ref[...]) + b1a_ref[...]).astype(z_ref.dtype)
    z_ref[:, 1 * hp:2 * hp] = (dot(x1_ref[...], w1b_ref[...]) + b1b_ref[...]).astype(z_ref.dtype)
    z_ref[:, 2 * hp:3 * hp] = (dot(x2_ref[...], w1c_ref[...]) + b1c_ref[...]).astype(z_ref.dtype)


def _agg_next_kernel(zs_ref, z1_ref, z2_ref, a1_ref, a2_ref, wn_ref, bn_ref, zout_ref):
    """x = relu(z_self) + relu(A1_rows @ Z_one) + relu(A2_rows @ Z_two);
    then the NEXT layer's per-node linear: zout = x @ W_next + b_next."""
    f32 = jnp.float32
    dot = lambda a, b: jnp.dot(a, b, preferred_element_type=f32)
    relu = lambda v: jnp.maximum(v, 0.0)
    x = (relu(zs_ref[...])
         + relu(dot(a1_ref[...], z1_ref[...]))
         + relu(dot(a2_ref[...], z2_ref[...])))
    zout_ref[...] = (dot(x, wn_ref[...]) + bn_ref[...]).astype(zout_ref.dtype)


def _agg_final_kernel(zs_ref, z1_ref, z2_ref, a1_ref, a2_ref, out_ref):
    """Layer-3 aggregation (no relu): out = z_self + A1_rows @ Z_one + A2_rows @ Z_two."""
    f32 = jnp.float32
    dot = lambda a, b: jnp.dot(a, b, preferred_element_type=f32)
    out_ref[...] = (zs_ref[...]
                    + dot(a1_ref[...], z1_ref[...])
                    + dot(a2_ref[...], z2_ref[...])).astype(out_ref.dtype)


def _forward_tiled(prep, one_adj, two_adj, x0, x1, x2, tm, vmem_limit):
    n = x0.shape[0]
    fp, hp, op = prep["fp"], prep["hp"], prep["op"]

    n_pad = _round_up(n, tm)          # tm is a multiple of 128 -> n_pad lane/sublane clean
    pad_r = n_pad - n
    # Row/col zero-padding is exact: padded adjacency rows/cols are zero, so padded-row
    # garbage in the activations never reaches a real row; it is sliced off at the end.
    a1 = jnp.pad(one_adj, ((0, pad_r), (0, pad_r)))
    a2 = jnp.pad(two_adj, ((0, pad_r), (0, pad_r)))
    x0 = jnp.pad(x0, ((0, pad_r), (0, 0)))
    x1 = jnp.pad(x1, ((0, pad_r), (0, 0)))
    x2 = jnp.pad(x2, ((0, pad_r), (0, 0)))

    grid = (n_pad // tm,)
    cp = pltpu.CompilerParams(dimension_semantics=("parallel",),
                              vmem_limit_bytes=vmem_limit)

    # ---- stage 1: layer-1 per-node linear -> Z1 (n_pad, 3hp) -------------------------
    z1 = pl.pallas_call(
        functools.partial(_lin1_kernel, hp=hp),
        out_shape=jax.ShapeDtypeStruct((n_pad, 3 * hp), jnp.float32),
        grid=grid,
        in_specs=[pl.BlockSpec((tm, fp), lambda i: (i, 0)),
                  pl.BlockSpec((tm, fp), lambda i: (i, 0)),
                  pl.BlockSpec((tm, fp), lambda i: (i, 0)),
                  pl.BlockSpec((fp, hp), lambda i: (0, 0)),
                  pl.BlockSpec((1, hp), lambda i: (0, 0)),
                  pl.BlockSpec((fp, hp), lambda i: (0, 0)),
                  pl.BlockSpec((1, hp), lambda i: (0, 0)),
                  pl.BlockSpec((fp, hp), lambda i: (0, 0)),
                  pl.BlockSpec((1, hp), lambda i: (0, 0))],
        out_specs=pl.BlockSpec((tm, 3 * hp), lambda i: (i, 0)),
        compiler_params=cp,
    )(x0, x1, x2, prep["w1a"], prep["b1a"], prep["w1b"], prep["b1b"],
      prep["w1c"], prep["b1c"])

    def agg_next(z, w_cat, b_cat, in_w, out_w):
        # z is passed three times with different BlockSpecs: a row block of its "self"
        # column slab, and the full "one"/"two" column slabs (resident across the grid).
        return pl.pallas_call(
            _agg_next_kernel,
            out_shape=jax.ShapeDtypeStruct((n_pad, out_w), jnp.float32),
            grid=grid,
            in_specs=[pl.BlockSpec((tm, in_w), lambda i: (i, 0)),
                      pl.BlockSpec((n_pad, in_w), lambda i: (0, 1)),
                      pl.BlockSpec((n_pad, in_w), lambda i: (0, 2)),
                      pl.BlockSpec((tm, n_pad), lambda i: (i, 0)),   # A1 row block (pipelined DMA)
                      pl.BlockSpec((tm, n_pad), lambda i: (i, 0)),   # A2 row block (pipelined DMA)
                      pl.BlockSpec((in_w, out_w), lambda i: (0, 0)),
                      pl.BlockSpec((1, out_w), lambda i: (0, 0))],
            out_specs=pl.BlockSpec((tm, out_w), lambda i: (i, 0)),
            compiler_params=cp,
        )(z, z, z, a1, a2, w_cat, b_cat)

    # ---- stage 2: layer-1 aggregation + layer-2 linear -> Z2 (n_pad, 3hp) ------------
    z2 = agg_next(z1, prep["w2c"], prep["b2c"], hp, 3 * hp)
    # ---- stage 3: layer-2 aggregation + layer-3 linear -> Z3 (n_pad, 3op) ------------
    z3 = agg_next(z2, prep["w3c"], prep["b3c"], hp, 3 * op)

    # ---- stage 4: layer-3 aggregation (no relu) --------------------------------------
    out = pl.pallas_call(
        _agg_final_kernel,
        out_shape=jax.ShapeDtypeStruct((n_pad, op), jnp.float32),
        grid=grid,
        in_specs=[pl.BlockSpec((tm, op), lambda i: (i, 0)),
                  pl.BlockSpec((n_pad, op), lambda i: (0, 1)),
                  pl.BlockSpec((n_pad, op), lambda i: (0, 2)),
                  pl.BlockSpec((tm, n_pad), lambda i: (i, 0)),
                  pl.BlockSpec((tm, n_pad), lambda i: (i, 0))],
        out_specs=pl.BlockSpec((tm, op), lambda i: (i, 0)),
        compiler_params=cp,
    )(z3, z3, z3, a1, a2)
    return out


# --------------------------------------------------------------------------------------
# Public forward (node path, eval mode)
# --------------------------------------------------------------------------------------


def forward(prep, one_adj, two_adj, original_feature, one_processed_feature,
            two_processed_feature, *, mode="auto", row_tile=256):
    """Returns [N, output_dim]. `prep` comes from prepare_params()."""
    n, feat_dim = original_feature.shape
    fp = prep["fp"]
    out_dim = prep["output_dim"]
    vmem_limit = _vmem_limit_bytes()

    pad_c = fp - feat_dim
    x0 = jnp.pad(original_feature, ((0, 0), (0, pad_c)))
    x1 = jnp.pad(one_processed_feature, ((0, 0), (0, pad_c)))
    x2 = jnp.pad(two_processed_feature, ((0, 0), (0, pad_c)))

    if mode == "auto":
        hp, op = prep["hp"], prep["op"]
        w_bytes = sum(int(prep[k].size) * 4 for k in ("w1a", "w1b", "w1c", "w2c", "w3c"))
        act_bytes = 4 * (2 * n * n + 3 * n * fp + 6 * n * hp + 4 * n * op)
        mode = "fused" if int(1.5 * (w_bytes + act_bytes)) < vmem_limit else "tiled"

    if mode == "fused":
        out = _forward_fused(prep, one_adj, two_adj, x0, x1, x2, vmem_limit)
    else:
        out = _forward_tiled(prep, one_adj, two_adj, x0, x1, x2, row_tile, vmem_limit)

    return out[:n, :out_dim]


# ---------------- parameter construction (deterministic, PyTorch-Linear-like init) ----


def _init_linear(key, fan_in, fan_out):
    kw, kb = jax.random.split(key)
    bound = 1.0 / (fan_in ** 0.5)
    w = jax.random.uniform(kw, (fan_in, fan_out), jnp.float32, -bound, bound)
    b = jax.random.uniform(kb, (fan_out,), jnp.float32, -bound, bound)
    return w, b


def init_params(key, feat_dim, hidden_dim, output_dim):
    layer_defs = {
        "lin1": (feat_dim, hidden_dim),
        "lin1_1": (feat_dim, hidden_dim),
        "lin1_2": (feat_dim, hidden_dim),
        "lin2": (hidden_dim, hidden_dim),
        "lin2_1": (hidden_dim, hidden_dim),
        "lin2_2": (hidden_dim, hidden_dim),
        "lin3_node": (hidden_dim, output_dim),
        "lin3_1_node": (hidden_dim, output_dim),
        "lin3_2_node": (hidden_dim, output_dim),
        # edge-path params exist in the module but are unused when query_edges is None
        "lin3_edge": (hidden_dim, hidden_dim),
        "lin3_1_edge": (hidden_dim, hidden_dim),
        "lin3_2_edge": (hidden_dim, hidden_dim),
        "linear": (hidden_dim * 2, output_dim),
    }
    keys = jax.random.split(key, len(layer_defs))
    return {name: _init_linear(k, fi, fo)
            for k, (name, (fi, fo)) in zip(keys, layer_defs.items())}


# ---------------- pure-JAX reference mirroring the PyTorch forward (eval mode) --------


def ref_forward(params, one_adj, two_adj, orig, one_feat, two_feat):
    mm = lambda a, b: jnp.matmul(a, b, precision=jax.lax.Precision.HIGHEST)
    lin = lambda p, x: mm(x, p[0]) + p[1]
    relu = lambda v: jnp.maximum(v, 0.0)

    x = (relu(lin(params["lin1"], orig))
         + relu(mm(one_adj, lin(params["lin1_1"], one_feat)))
         + relu(mm(two_adj, lin(params["lin1_2"], two_feat))))
    x = (relu(lin(params["lin2"], x))
         + relu(mm(one_adj, lin(params["lin2_1"], x)))
         + relu(mm(two_adj, lin(params["lin2_2"], x))))
    x = (lin(params["lin3_node"], x)
         + mm(one_adj, lin(params["lin3_1_node"], x))
         + mm(two_adj, lin(params["lin3_2_node"], x)))
    return x


if __name__ == "__main__":
    def make_case(key, n, feat, hidden, out):
        k_par, k_a1, k_a2, k_x0, k_x1, k_x2 = jax.random.split(key, 6)
        params = init_params(k_par, feat, hidden, out)
        a1 = jax.random.uniform(k_a1, (n, n), jnp.float32)
        one_adj = a1 / jnp.sum(a1, axis=-1, keepdims=True)
        a2 = jax.random.uniform(k_a2, (n, n), jnp.float32)
        two_adj = a2 / jnp.sum(a2, axis=-1, keepdims=True)
        x0 = jax.random.normal(k_x0, (n, feat), jnp.float32)
        x1 = jax.random.normal(k_x1, (n, feat), jnp.float32)
        x2 = jax.random.normal(k_x2, (n, feat), jnp.float32)
        return params, one_adj, two_adj, x0, x1, x2

    root = jax.random.PRNGKey(0)
    k1, k2 = jax.random.split(root)

    # ---- case 1: small graph -> fully fused single-launch, VMEM-resident path -------
    N, FEAT, HID, OUT = 64, 32, 32, 16
    params, one_adj, two_adj, x0, x1, x2 = make_case(k1, N, FEAT, HID, OUT)
    prep = prepare_params(params)
    out = jax.block_until_ready(forward(prep, one_adj, two_adj, x0, x1, x2, mode="fused"))
    ref = ref_forward(params, one_adj, two_adj, x0, x1, x2)
    assert out.shape == (N, OUT), out.shape
    assert jnp.allclose(out, ref, atol=1e-3, rtol=1e-3), \
        float(jnp.max(jnp.abs(out - ref)))

    # ---- case 2: larger, misaligned graph -> row-tiled "parallel"-grid path ---------
    N2, FEAT2, HID2, OUT2 = 300, 40, 64, 48
    params, one_adj, two_adj, x0, x1, x2 = make_case(k2, N2, FEAT2, HID2, OUT2)
    prep = prepare_params(params)
    out = jax.block_until_ready(
        forward(prep, one_adj, two_adj, x0, x1, x2, mode="tiled", row_tile=256))
    ref = ref_forward(params, one_adj, two_adj, x0, x1, x2)
    assert out.shape == (N2, OUT2), out.shape
    assert jnp.allclose(out, ref, atol=1e-3, rtol=1e-3), \
        float(jnp.max(jnp.abs(out - ref)))

    print("KERNEL_OK")
</pallas_src>

<mosaic_0001>
module attributes {stable_mosaic.version = 11 : i64} {
  func.func @_fused_gcn_kernel(%arg0: memref<64x64xf32, #tpu.memory_space<vmem>>, %arg1: memref<64x64xf32, #tpu.memory_space<vmem>>, %arg2: memref<64x128xf32, #tpu.memory_space<vmem>>, %arg3: memref<64x128xf32, #tpu.memory_space<vmem>>, %arg4: memref<64x128xf32, #tpu.memory_space<vmem>>, %arg5: memref<128x128xf32, #tpu.memory_space<vmem>>, %arg6: memref<1x128xf32, #tpu.memory_space<vmem>>, %arg7: memref<128x128xf32, #tpu.memory_space<vmem>>, %arg8: memref<1x128xf32, #tpu.memory_space<vmem>>, %arg9: memref<128x128xf32, #tpu.memory_space<vmem>>, %arg10: memref<1x128xf32, #tpu.memory_space<vmem>>, %arg11: memref<128x384xf32, #tpu.memory_space<vmem>>, %arg12: memref<1x384xf32, #tpu.memory_space<vmem>>, %arg13: memref<128x384xf32, #tpu.memory_space<vmem>>, %arg14: memref<1x384xf32, #tpu.memory_space<vmem>>, %arg15: memref<64x128xf32, #tpu.memory_space<vmem>>) attributes {dimension_semantics = [], scalar_prefetch = 0 : i64, scratch_operands = 0 : i64, tpu.core_type = #tpu.core_type<tc>} {
    %c0 = arith.constant 0 : index
    %c0_0 = arith.constant 0 : index
    %0 = vector.load %arg0[%c0, %c0_0] : memref<64x64xf32, #tpu.memory_space<vmem>>, vector<64x64xf32>
    %c0_1 = arith.constant 0 : index
    %c0_2 = arith.constant 0 : index
    %1 = vector.load %arg1[%c0_1, %c0_2] : memref<64x64xf32, #tpu.memory_space<vmem>>, vector<64x64xf32>
    %c0_3 = arith.constant 0 : index
    %c0_4 = arith.constant 0 : index
    %2 = vector.load %arg2[%c0_3, %c0_4] : memref<64x128xf32, #tpu.memory_space<vmem>>, vector<64x128xf32>
    %c0_5 = arith.constant 0 : index
    %c0_6 = arith.constant 0 : index
    %3 = vector.load %arg5[%c0_5, %c0_6] : memref<128x128xf32, #tpu.memory_space<vmem>>, vector<128x128xf32>
    %cst = arith.constant dense<0.000000e+00> : vector<64x128xf32>
    %4 = tpu.matmul %2, %3, %cst {dimension_numbers = #tpu.dot_dimension_numbers<[1], [0], [0], [1], [0, 0, 1, 1], [], []>} : vector<64x128xf32>, vector<128x128xf32>, vector<64x128xf32> -> vector<64x128xf32>
    %c0_7 = arith.constant 0 : index
    %c0_8 = arith.constant 0 : index
    %5 = vector.load %arg6[%c0_7, %c0_8] : memref<1x128xf32, #tpu.memory_space<vmem>>, vector<1x128xf32>
    %6 = vector.broadcast %5 : vector<1x128xf32> to vector<64x128xf32>
    %7 = arith.addf %4, %6 : vector<64x128xf32>
    %c0_9 = arith.constant 0 : index
    %c0_10 = arith.constant 0 : index
    %8 = vector.load %arg3[%c0_9, %c0_10] : memref<64x128xf32, #tpu.memory_space<vmem>>, vector<64x128xf32>
    %c0_11 = arith.constant 0 : index
    %c0_12 = arith.constant 0 : index
    %9 = vector.load %arg7[%c0_11, %c0_12] : memref<128x128xf32, #tpu.memory_space<vmem>>, vector<128x128xf32>
    %cst_13 = arith.constant dense<0.000000e+00> : vector<64x128xf32>
    %10 = tpu.matmul %8, %9, %cst_13 {dimension_numbers = #tpu.dot_dimension_numbers<[1], [0], [0], [1], [0, 0, 1, 1], [], []>} : vector<64x128xf32>, vector<128x128xf32>, vector<64x128xf32> -> vector<64x128xf32>
    %c0_14 = arith.constant 0 : index
    %c0_15 = arith.constant 0 : index
    %11 = vector.load %arg8[%c0_14, %c0_15] : memref<1x128xf32, #tpu.memory_space<vmem>>, vector<1x128xf32>
    %12 = vector.broadcast %11 : vector<1x128xf32> to vector<64x128xf32>
    %13 = arith.addf %10, %12 : vector<64x128xf32>
    %c0_16 = arith.constant 0 : index
    %c0_17 = arith.constant 0 : index
    %14 = vector.load %arg4[%c0_16, %c0_17] : memref<64x128xf32, #tpu.memory_space<vmem>>, vector<64x128xf32>
    %c0_18 = arith.constant 0 : index
    %c0_19 = arith.constant 0 : index
    %15 = vector.load %arg9[%c0_18, %c0_19] : memref<128x128xf32, #tpu.memory_space<vmem>>, vector<128x128xf32>
    %cst_20 = arith.constant dense<0.000000e+00> : vector<64x128xf32>
    %16 = tpu.matmul %14, %15, %cst_20 {dimension_numbers = #tpu.dot_dimension_numbers<[1], [0], [0], [1], [0, 0, 1, 1], [], []>} : vector<64x128xf32>, vector<128x128xf32>, vector<64x128xf32> -> vector<64x128xf32>
    %c0_21 = arith.constant 0 : index
    %c0_22 = arith.constant 0 : index
    %17 = vector.load %arg10[%c0_21, %c0_22] : memref<1x128xf32, #tpu.memory_space<vmem>>, vector<1x128xf32>
    %18 = vector.broadcast %17 : vector<1x128xf32> to vector<64x128xf32>
    %19 = arith.addf %16, %18 : vector<64x128xf32>
    %cst_23 = arith.constant 0.000000e+00 : f32
    %20 = vector.broadcast %cst_23 : f32 to vector<64x128xf32>
    %21 = arith.maximumf %7, %20 : vector<64x128xf32>
    %cst_24 = arith.constant dense<0.000000e+00> : vector<64x128xf32>
    %22 = tpu.matmul %0, %13, %cst_24 {dimension_numbers = #tpu.dot_dimension_numbers<[1], [0], [0], [1], [0, 0, 1, 1], [], []>} : vector<64x64xf32>, vector<64x128xf32>, vector<64x128xf32> -> vector<64x128xf32>
    %cst_25 = arith.constant 0.000000e+00 : f32
    %23 = vector.broadcast %cst_25 : f32 to vector<64x128xf32>
    %24 = arith.maximumf %22, %23 : vector<64x128xf32>
    %25 = arith.addf %21, %24 : vector<64x128xf32>
    %cst_26 = arith.constant dense<0.000000e+00> : vector<64x128xf32>
    %26 = tpu.matmul %1, %19, %cst_26 {dimension_numbers = #tpu.dot_dimension_numbers<[1], [0], [0], [1], [0, 0, 1, 1], [], []>} : vector<64x64xf32>, vector<64x128xf32>, vector<64x128xf32> -> vector<64x128xf32>
    %cst_27 = arith.constant 0.000000e+00 : f32
    %27 = vector.broadcast %cst_27 : f32 to vector<64x128xf32>
    %28 = arith.maximumf %26, %27 : vector<64x128xf32>
    %29 = arith.addf %25, %28 : vector<64x128xf32>
    %c0_28 = arith.constant 0 : index
    %c0_29 = arith.constant 0 : index
    %30 = vector.load %arg11[%c0_28, %c0_29] : memref<128x384xf32, #tpu.memory_space<vmem>>, vector<128x384xf32>
    %cst_30 = arith.constant dense<0.000000e+00> : vector<64x384xf32>
    %31 = tpu.matmul %29, %30, %cst_30 {dimension_numbers = #tpu.dot_dimension_numbers<[1], [0], [0], [1], [0, 0, 1, 1], [], []>} : vector<64x128xf32>, vector<128x384xf32>, vector<64x384xf32> -> vector<64x384xf32>
    %c0_31 = arith.constant 0 : index
    %c0_32 = arith.constant 0 : index
    %32 = vector.load %arg12[%c0_31, %c0_32] : memref<1x384xf32, #tpu.memory_space<vmem>>, vector<1x384xf32>
    %33 = vector.broadcast %32 : vector<1x384xf32> to vector<64x384xf32>
    %34 = arith.addf %31, %33 : vector<64x384xf32>
    %35 = vector.extract_strided_slice %34 {offsets = [0, 0], sizes = [64, 128], strides = [1, 1]} : vector<64x384xf32> to vector<64x128xf32>
    %cst_33 = arith.constant 0.000000e+00 : f32
    %36 = vector.broadcast %cst_33 : f32 to vector<64x128xf32>
    %37 = arith.maximumf %35, %36 : vector<64x128xf32>
    %38 = vector.extract_strided_slice %34 {offsets = [0, 128], sizes = [64, 128], strides = [1, 1]} : vector<64x384xf32> to vector<64x128xf32>
    %cst_34 = arith.constant dense<0.000000e+00> : vector<64x128xf32>
    %39 = tpu.matmul %0, %38, %cst_34 {dimension_numbers = #tpu.dot_dimension_numbers<[1], [0], [0], [1], [0, 0, 1, 1], [], []>} : vector<64x64xf32>, vector<64x128xf32>, vector<64x128xf32> -> vector<64x128xf32>
    %cst_35 = arith.constant 0.000000e+00 : f32
    %40 = vector.broadcast %cst_35 : f32 to vector<64x128xf32>
    %41 = arith.maximumf %39, %40 : vector<64x128xf32>
    %42 = arith.addf %37, %41 : vector<64x128xf32>
    %43 = vector.extract_strided_slice %34 {offsets = [0, 256], sizes = [64, 128], strides = [1, 1]} : vector<64x384xf32> to vector<64x128xf32>
    %cst_36 = arith.constant dense<0.000000e+00> : vector<64x128xf32>
    %44 = tpu.matmul %1, %43, %cst_36 {dimension_numbers = #tpu.dot_dimension_numbers<[1], [0], [0], [1], [0, 0, 1, 1], [], []>} : vector<64x64xf32>, vector<64x128xf32>, vector<64x128xf32> -> vector<64x128xf32>
    %cst_37 = arith.constant 0.000000e+00 : f32
    %45 = vector.broadcast %cst_37 : f32 to vector<64x128xf32>
    %46 = arith.maximumf %44, %45 : vector<64x128xf32>
    %47 = arith.addf %42, %46 : vector<64x128xf32>
    %c0_38 = arith.constant 0 : index
    %c0_39 = arith.constant 0 : index
    %48 = vector.load %arg13[%c0_38, %c0_39] : memref<128x384xf32, #tpu.memory_space<vmem>>, vector<128x384xf32>
    %cst_40 = arith.constant dense<0.000000e+00> : vector<64x384xf32>
    %49 = tpu.matmul %47, %48, %cst_40 {dimension_numbers = #tpu.dot_dimension_numbers<[1], [0], [0], [1], [0, 0, 1, 1], [], []>} : vector<64x128xf32>, vector<128x384xf32>, vector<64x384xf32> -> vector<64x384xf32>
    %c0_41 = arith.constant 0 : index
    %c0_42 = arith.constant 0 : index
    %50 = vector.load %arg14[%c0_41, %c0_42] : memref<1x384xf32, #tpu.memory_space<vmem>>, vector<1x384xf32>
    %51 = vector.broadcast %50 : vector<1x384xf32> to vector<64x384xf32>
    %52 = arith.addf %49, %51 : vector<64x384xf32>
    %53 = vector.extract_strided_slice %52 {offsets = [0, 0], sizes = [64, 128], strides = [1, 1]} : vector<64x384xf32> to vector<64x128xf32>
    %54 = vector.extract_strided_slice %52 {offsets = [0, 128], sizes = [64, 128], strides = [1, 1]} : vector<64x384xf32> to vector<64x128xf32>
    %cst_43 = arith.constant dense<0.000000e+00> : vector<64x128xf32>
    %55 = tpu.matmul %0, %54, %cst_43 {dimension_numbers = #tpu.dot_dimension_numbers<[1], [0], [0], [1], [0, 0, 1, 1], [], []>} : vector<64x64xf32>, vector<64x128xf32>, vector<64x128xf32> -> vector<64x128xf32>
    %56 = arith.addf %53, %55 : vector<64x128xf32>
    %57 = vector.extract_strided_slice %52 {offsets = [0, 256], sizes = [64, 128], strides = [1, 1]} : vector<64x384xf32> to vector<64x128xf32>
    %cst_44 = arith.constant dense<0.000000e+00> : vector<64x128xf32>
    %58 = tpu.matmul %1, %57, %cst_44 {dimension_numbers = #tpu.dot_dimension_numbers<[1], [0], [0], [1], [0, 0, 1, 1], [], []>} : vector<64x64xf32>, vector<64x128xf32>, vector<64x128xf32> -> vector<64x128xf32>
    %59 = arith.addf %56, %58 : vector<64x128xf32>
    %c0_45 = arith.constant 0 : index
    %c0_46 = arith.constant 0 : index
    %60 = vector.load %arg15[%c0_45, %c0_46] : memref<64x128xf32, #tpu.memory_space<vmem>>, vector<64x128xf32>
    tpu.vector_store %arg15[%c0_45, %c0_46], %59 {strides = array<i32>} : memref<64x128xf32, #tpu.memory_space<vmem>>, vector<64x128xf32>,
    return
  }
}

</mosaic_0001>

<llo_original>
// kernel: tpu_custom_call.1
$region0: #{tpu_custom_call.1}
  #allocation0 [shape = 'u32[]', space=smem, size = 0x4, offset = 0x4, fixed_abs, tag = 'smem constant byte address 0x4 - core index']
  #allocation1 [shape = 'u32[72,128]{1,0:T(1,128)}', space=vmem, size = 0x9000, scoped, tag = 'internal scratch']
  %s0 = inlined_call_operand.hbm [shape: f32[64,64], index: 0, kind: input, shape index: {}]
  %s1 = inlined_call_operand.hbm [shape: f32[64,64], index: 1, kind: input, shape index: {}]
  %s2 = inlined_call_operand.hbm [shape: f32[64,128], index: 2, kind: input, shape index: {}]
  %s3 = inlined_call_operand.hbm [shape: f32[64,128], index: 3, kind: input, shape index: {}]
  %s4 = inlined_call_operand.hbm [shape: f32[64,128], index: 4, kind: input, shape index: {}]
  %s5 = inlined_call_operand.hbm [shape: f32[128,128], index: 5, kind: input, shape index: {}]
  %s6 = inlined_call_operand.hbm [shape: f32[1,128], index: 6, kind: input, shape index: {}]
  %s7 = inlined_call_operand.hbm [shape: f32[128,128], index: 7, kind: input, shape index: {}]
  %s8 = inlined_call_operand.vmem [shape: f32[1,128], index: 8, kind: input, shape index: {}]
  %s9 = inlined_call_operand.hbm [shape: f32[128,128], index: 9, kind: input, shape index: {}]
  %s10 = inlined_call_operand.vmem [shape: f32[1,128], index: 10, kind: input, shape index: {}]
  %s11 = inlined_call_operand.hbm [shape: f32[128,384], index: 11, kind: input, shape index: {}]
  %s12 = inlined_call_operand.vmem [shape: f32[1,384], index: 12, kind: input, shape index: {}]
  %s13 = inlined_call_operand.hbm [shape: f32[128,384], index: 13, kind: input, shape index: {}]
  %s14 = inlined_call_operand.vmem [shape: f32[1,384], index: 14, kind: input, shape index: {}]
  %s15 = inlined_call_operand.hbm [shape: f32[64,128], index: 15, kind: output, shape index: {}]
  %s16 = sld [smem:[#allocation0]]
  $region114: #{tpu_custom_call.1} parent=0
    _
  %s18 = ssub.s32 1, %s16
  %s19 = scalar_select 0, %s18, %s16
  $region1: #{tpu_custom_call.1} parent=0
    #allocation2 [shape = 'u8[32768]{0}', space=vmem, size = 0x8000, scoped, tag = 'input window, operand 0, single buffered']
    #allocation3 [shape = 's32[1]{0}', space=sflag, size = 0x4, scoped, tag = 'scoped memory for tpu_custom_call.1']
    #allocation4 [shape = 's32[1]{0}', space=sflag, size = 0x4, scoped, tag = 'scoped memory for tpu_custom_call.1']
    #allocation5 [shape = 'u8[32768]{0}', space=vmem, size = 0x8000, scoped, tag = 'input window, operand 1, single buffered']
    #allocation6 [shape = 's32[1]{0}', space=sflag, size = 0x4, scoped, tag = 'scoped memory for tpu_custom_call.1']
    #allocation7 [shape = 'u8[32768]{0}', space=vmem, size = 0x8000, scoped, tag = 'input window, operand 2, single buffered']
    #allocation8 [shape = 'u8[32768]{0}', space=vmem, size = 0x8000, scoped, tag = 'input window, operand 3, single buffered']
    #allocation9 [shape = 's32[1]{0}', space=sflag, size = 0x4, scoped, tag = 'scoped memory for tpu_custom_call.1']
    #allocation10 [shape = 'u8[32768]{0}', space=vmem, size = 0x8000, scoped, tag = 'input window, operand 4, single buffered']
    #allocation11 [shape = 'u8[65536]{0}', space=vmem, size = 0x10000, scoped, tag = 'input window, operand 5, single buffered']
    #allocation12 [shape = 's32[1]{0}', space=sflag, size = 0x4, scoped, tag = 'scoped memory for tpu_custom_call.1']
    #allocation13 [shape = 'u8[512]{0}', space=vmem, size = 0x400, scoped, tag = 'input window, operand 6, single buffered']
    #allocation14 [shape = 'u8[65536]{0}', space=vmem, size = 0x10000, scoped, tag = 'input window, operand 7, single buffered']
    #allocation15 [shape = 's32[1]{0}', space=sflag, size = 0x4, scoped, tag = 'scoped memory for tpu_custom_call.1']
    #allocation16 [shape = 'u8[65536]{0}', space=vmem, size = 0x10000, scoped, tag = 'input window, operand 9, single buffered']
    #allocation17 [shape = 'u8[196608]{0}', space=vmem, size = 0x30000, scoped, tag = 'input window, operand 11, single buffered']
    #allocation18 [shape = 's32[1]{0}', space=sflag, size = 0x4, scoped, tag = 'scoped memory for tpu_custom_call.1']
    #allocation19 [shape = 'u8[196608]{0}', space=vmem, size = 0x30000, scoped, tag = 'input window, operand 13, single buffered']
    #allocation20 [shape = 'u8[32768]{0}', space=vmem, size = 0x8000, scoped, tag = 'output window, operand 0, single buffered']
    %20 = vsyncpa [#allocation3], 0
    %21 = vsyncpa [#allocation6], 0
    %22 = vsyncpa [#allocation9], 0
    %23 = vsyncpa [#allocation12], 0
    %24 = vsyncpa [#allocation15], 0
    %25 = vsyncpa [#allocation18], 0
    %26 = vsyncpa [#allocation4], 0
    // Predicated region
    $region2: #{tpu_custom_call.1} parent=1 // pred_check
      _
    $region3: #{tpu_custom_call.1} parent=1 // pred_check_branch
      %28 = sbr.rel (0) target = $region5
    $region4: #{tpu_custom_call.1} parent=1 // pred_region
      %30 = vsyncadd [#allocation3], 0
      %s31 = sshll.u32 %s0, 4
      %s32 = int_to_ptr.hbm [resolvable:$true] %s31
      %s33 = sshll.u32 [#allocation2], 4
      %s34 = int_to_ptr.vmem [resolvable:$true] %s33
      %39 = dma.hbm_to_vmem [thread:$0]  %s32, 1024, %s34, [#allocation3], 128, 128, 8
    $region5: #{tpu_custom_call.1} parent=1 // pred_fallthru
      _
    // Predicated region
    $region6: #{tpu_custom_call.1} parent=1 // pred_check
      _
    $region7: #{tpu_custom_call.1} parent=1 // pred_check_branch
      %41 = sbr.rel (0) target = $region9
    $region8: #{tpu_custom_call.1} parent=1 // pred_region
      %43 = vsyncadd [#allocation6], 0
      %s44 = sshll.u32 %s1, 4
      %s45 = int_to_ptr.hbm [resolvable:$true] %s44
      %s46 = sshll.u32 [#allocation5], 4
      %s47 = int_to_ptr.vmem [resolvable:$true] %s46
      %52 = dma.hbm_to_vmem [thread:$0]  %s45, 1024, %s47, [#allocation6], 128, 128, 8
    $region9: #{tpu_custom_call.1} parent=1 // pred_fallthru
      _
    // Predicated region
    $region10: #{tpu_custom_call.1} parent=1 // pred_check
      _
    $region11: #{tpu_custom_call.1} parent=1 // pred_check_branch
      %54 = sbr.rel (0) target = $region13
    $region12: #{tpu_custom_call.1} parent=1 // pred_region
      %56 = vsyncadd [#allocation6], 0
      %s57 = sshll.u32 %s2, 4
      %s58 = int_to_ptr.hbm [resolvable:$true] %s57
      %s59 = sshll.u32 [#allocation7], 4
      %s60 = int_to_ptr.vmem [resolvable:$true] %s59
      %65 = dma.hbm_to_vmem [thread:$0]  %s58, 1024, %s60, [#allocation6], 128, 128, 8
    $region13: #{tpu_custom_call.1} parent=1 // pred_fallthru
      _
    // Predicated region
    $region14: #{tpu_custom_call.1} parent=1 // pred_check
      _
    $region15: #{tpu_custom_call.1} parent=1 // pred_check_branch
      %67 = sbr.rel (0) target = $region17
    $region16: #{tpu_custom_call.1} parent=1 // pred_region
      %69 = vsyncadd [#allocation9], 0
      %s70 = sshll.u32 %s3, 4
      %s71 = int_to_ptr.hbm [resolvable:$true] %s70
      %s72 = sshll.u32 [#allocation8], 4
      %s73 = int_to_ptr.vmem [resolvable:$true] %s72
      %78 = dma.hbm_to_vmem [thread:$0]  %s71, 1024, %s73, [#allocation9], 128, 128, 8
    $region17: #{tpu_custom_call.1} parent=1 // pred_fallthru
      _
    // Predicated region
    $region18: #{tpu_custom_call.1} parent=1 // pred_check
      _
    $region19: #{tpu_custom_call.1} parent=1 // pred_check_branch
      %80 = sbr.rel (0) target = $region21
    $region20: #{tpu_custom_call.1} parent=1 // pred_region
      %82 = vsyncadd [#allocation9], 0
      %s83 = sshll.u32 %s4, 4
      %s84 = int_to_ptr.hbm [resolvable:$true] %s83
      %s85 = sshll.u32 [#allocation10], 4
      %s86 = int_to_ptr.vmem [resolvable:$true] %s85
      %91 = dma.hbm_to_vmem [thread:$0]  %s84, 1024, %s86, [#allocation9], 128, 128, 8
    $region21: #{tpu_custom_call.1} parent=1 // pred_fallthru
      _
    // Predicated region
    $region22: #{tpu_custom_call.1} parent=1 // pred_check
      _
    $region23: #{tpu_custom_call.1} parent=1 // pred_check_branch
      %93 = sbr.rel (0) target = $region25
    $region24: #{tpu_custom_call.1} parent=1 // pred_region
      %95 = vsyncadd [#allocation12], 0
      %s96 = sshll.u32 %s5, 4
      %s97 = int_to_ptr.hbm [resolvable:$true] %s96
      %s98 = sshll.u32 [#allocation11], 4
      %s99 = int_to_ptr.vmem [resolvable:$true] %s98
      %104 = dma.hbm_to_vmem [thread:$0]  %s97, 2048, %s99, [#allocation12], 128, 128, 8
    $region25: #{tpu_custom_call.1} parent=1 // pred_fallthru
      _
    // Predicated region
    $region26: #{tpu_custom_call.1} parent=1 // pred_check
      _
    $region27: #{tpu_custom_call.1} parent=1 // pred_check_branch
      %106 = sbr.rel (0) target = $region29
    $region28: #{tpu_custom_call.1} parent=1 // pred_region
      %108 = vsyncadd [#allocation12], 0
      %s110 = sshll.u32 %s6, 4
      %s111 = int_to_ptr.hbm [resolvable:$true] %s110
      %s112 = sshll.u32 [#allocation13], 4
      %s113 = int_to_ptr.vmem [resolvable:$true] %s112
      %115 = dma.hbm_to_vmem [thread:$0]  %s111, 16, %s113, [#allocation12]
    $region29: #{tpu_custom_call.1} parent=1 // pred_fallthru
      _
    // Predicated region
    $region30: #{tpu_custom_call.1} parent=1 // pred_check
      _
    $region31: #{tpu_custom_call.1} parent=1 // pred_check_branch
      %117 = sbr.rel (0) target = $region33
    $region32: #{tpu_custom_call.1} parent=1 // pred_region
      %119 = vsyncadd [#allocation15], 0
      %s120 = sshll.u32 %s7, 4
      %s121 = int_to_ptr.hbm [resolvable:$true] %s120
      %s122 = sshll.u32 [#allocation14], 4
      %s123 = int_to_ptr.vmem [resolvable:$true] %s122
      %128 = dma.hbm_to_vmem [thread:$0]  %s121, 2048, %s123, [#allocation15], 128, 128, 8
    $region33: #{tpu_custom_call.1} parent=1 // pred_fallthru
      _
    // Predicated region
    $region34: #{tpu_custom_call.1} parent=1 // pred_check
      _
    $region35: #{tpu_custom_call.1} parent=1 // pred_check_branch
      %130 = sbr.rel (0) target = $region37
    $region36: #{tpu_custom_call.1} parent=1 // pred_region
      _
    $region37: #{tpu_custom_call.1} parent=1 // pred_fallthru
      _
    // Predicated region
    $region38: #{tpu_custom_call.1} parent=1 // pred_check
      _
    $region39: #{tpu_custom_call.1} parent=1 // pred_check_branch
      %132 = sbr.rel (0) target = $region41
    $region40: #{tpu_custom_call.1} parent=1 // pred_region
      %134 = vsyncadd [#allocation15], 0
      %s135 = sshll.u32 %s9, 4
      %s136 = int_to_ptr.hbm [resolvable:$true] %s135
      %s137 = sshll.u32 [#allocation16], 4
      %s138 = int_to_ptr.vmem [resolvable:$true] %s137
      %143 = dma.hbm_to_vmem [thread:$0]  %s136, 2048, %s138, [#allocation15], 128, 128, 8
    $region41: #{tpu_custom_call.1} parent=1 // pred_fallthru
      _
    // Predicated region
    $region42: #{tpu_custom_call.1} parent=1 // pred_check
      _
    $region43: #{tpu_custom_call.1} parent=1 // pred_check_branch
      %145 = sbr.rel (0) target = $region45
    $region44: #{tpu_custom_call.1} parent=1 // pred_region
      _
    $region45: #{tpu_custom_call.1} parent=1 // pred_fallthru
      _
    // Predicated region
    $region46: #{tpu_custom_call.1} parent=1 // pred_check
      _
    $region47: #{tpu_custom_call.1} parent=1 // pred_check_branch
      %147 = sbr.rel (0) target = $region49
    $region48: #{tpu_custom_call.1} parent=1 // pred_region
      %149 = vsyncadd [#allocation18], 0
      %s150 = sshll.u32 %s11, 4
      %s151 = int_to_ptr.hbm [resolvable:$true] %s150
      %s152 = sshll.u32 [#allocation17], 4
      %s153 = int_to_ptr.vmem [resolvable:$true] %s152
      %158 = dma.hbm_to_vmem [thread:$0]  %s151, 6144, %s153, [#allocation18], 384, 384, 24
    $region49: #{tpu_custom_call.1} parent=1 // pred_fallthru
      _
    // Predicated region
    $region50: #{tpu_custom_call.1} parent=1 // pred_check
      _
    $region51: #{tpu_custom_call.1} parent=1 // pred_check_branch
      %160 = sbr.rel (0) target = $region53
    $region52: #{tpu_custom_call.1} parent=1 // pred_region
      _
    $region53: #{tpu_custom_call.1} parent=1 // pred_fallthru
      _
    // Predicated region
    $region54: #{tpu_custom_call.1} parent=1 // pred_check
      _
    $region55: #{tpu_custom_call.1} parent=1 // pred_check_branch
      %162 = sbr.rel (0) target = $region57
    $region56: #{tpu_custom_call.1} parent=1 // pred_region
      %164 = vsyncadd [#allocation18], 0
      %s165 = sshll.u32 %s13, 4
      %s166 = int_to_ptr.hbm [resolvable:$true] %s165
      %s167 = sshll.u32 [#allocation19], 4
      %s168 = int_to_ptr.vmem [resolvable:$true] %s167
      %173 = dma.hbm_to_vmem [thread:$0]  %s166, 6144, %s168, [#allocation18], 384, 384, 24
    $region57: #{tpu_custom_call.1} parent=1 // pred_fallthru
      _
    // Predicated region
    $region58: #{tpu_custom_call.1} parent=1 // pred_check
      _
    $region59: #{tpu_custom_call.1} parent=1 // pred_check_branch
      %175 = sbr.rel (0) target = $region61
    $region60: #{tpu_custom_call.1} parent=1 // pred_region
      _
    $region61: #{tpu_custom_call.1} parent=1 // pred_fallthru
      _
    // Predicated region
    $region62: #{tpu_custom_call.1} parent=1 // pred_check
      _
    $region63: #{tpu_custom_call.1} parent=1 // pred_check_branch
      %177 = sbr.rel (0) target = $region65
    $region64: #{tpu_custom_call.1} parent=1 // pred_region
      %179 = dma.done [#allocation3], 1024
    $region65: #{tpu_custom_call.1} parent=1 // pred_fallthru
      _
    // Predicated region
    $region66: #{tpu_custom_call.1} parent=1 // pred_check
      _
    $region67: #{tpu_custom_call.1} parent=1 // pred_check_branch
      %181 = sbr.rel (0) target = $region69
    $region68: #{tpu_custom_call.1} parent=1 // pred_region
      %183 = dma.done [#allocation6], 1024
    $region69: #{tpu_custom_call.1} parent=1 // pred_fallthru
      _
    // Predicated region
    $region70: #{tpu_custom_call.1} parent=1 // pred_check
      _
    $region71: #{tpu_custom_call.1} parent=1 // pred_check_branch
      %185 = sbr.rel (0) target = $region73
    $region72: #{tpu_custom_call.1} parent=1 // pred_region
      %187 = dma.done [#allocation6], 1024
    $region73: #{tpu_custom_call.1} parent=1 // pred_fallthru
      _
    // Predicated region
    $region74: #{tpu_custom_call.1} parent=1 // pred_check
      _
    $region75: #{tpu_custom_call.1} parent=1 // pred_check_branch
      %189 = sbr.rel (0) target = $region77
    $region76: #{tpu_custom_call.1} parent=1 // pred_region
      %191 = dma.done [#allocation9], 1024
    $region77: #{tpu_custom_call.1} parent=1 // pred_fallthru
      _
    // Predicated region
    $region78: #{tpu_custom_call.1} parent=1 // pred_check
      _
    $region79: #{tpu_custom_call.1} parent=1 // pred_check_branch
      %193 = sbr.rel (0) target = $region81
    $region80: #{tpu_custom_call.1} parent=1 // pred_region
      %195 = dma.done [#allocation9], 1024
    $region81: #{tpu_custom_call.1} parent=1 // pred_fallthru
      _
    // Predicated region
    $region82: #{tpu_custom_call.1} parent=1 // pred_check
      _
    $region83: #{tpu_custom_call.1} parent=1 // pred_check_branch
      %197 = sbr.rel (0) target = $region85
    $region84: #{tpu_custom_call.1} parent=1 // pred_region
      %199 = dma.done [#allocation12], 2048
    $region85: #{tpu_custom_call.1} parent=1 // pred_fallthru
      _
    // Predicated region
    $region86: #{tpu_custom_call.1} parent=1 // pred_check
      _
    $region87: #{tpu_custom_call.1} parent=1 // pred_check_branch
      %201 = sbr.rel (0) target = $region89
    $region88: #{tpu_custom_call.1} parent=1 // pred_region
      %203 = dma.done [#allocation12], 16
    $region89: #{tpu_custom_call.1} parent=1 // pred_fallthru
      _
    // Predicated region
    $region90: #{tpu_custom_call.1} parent=1 // pred_check
      _
    $region91: #{tpu_custom_call.1} parent=1 // pred_check_branch
      %205 = sbr.rel (0) target = $region93
    $region92: #{tpu_custom_call.1} parent=1 // pred_region
      %207 = dma.done [#allocation15], 2048
    $region93: #{tpu_custom_call.1} parent=1 // pred_fallthru
      _
    // Predicated region
    $region94: #{tpu_custom_call.1} parent=1 // pred_check
      _
    $region95: #{tpu_custom_call.1} parent=1 // pred_check_branch
      %209 = sbr.rel (0) target = $region97
    $region96: #{tpu_custom_call.1} parent=1 // pred_region
      %211 = dma.done [#allocation15], 2048
    $region97: #{tpu_custom_call.1} parent=1 // pred_fallthru
      _
    // Predicated region
    $region98: #{tpu_custom_call.1} parent=1 // pred_check
      _
    $region99: #{tpu_custom_call.1} parent=1 // pred_check_branch
      %213 = sbr.rel (0) target = $region101
    $region100: #{tpu_custom_call.1} parent=1 // pred_region
      %215 = dma.done [#allocation18], 6144
    $region101: #{tpu_custom_call.1} parent=1 // pred_fallthru
      _
    // Predicated region
    $region102: #{tpu_custom_call.1} parent=1 // pred_check
      _
    $region103: #{tpu_custom_call.1} parent=1 // pred_check_branch
      %217 = sbr.rel (0) target = $region105
    $region104: #{tpu_custom_call.1} parent=1 // pred_region
      %219 = dma.done [#allocation18], 6144
    $region105: #{tpu_custom_call.1} parent=1 // pred_fallthru
      _
    %v220 = vld [vmem:[#allocation2] sm:$0xff]
    %v221 = vld [vmem:[#allocation2 + $0x8] sm:$0xff]
    %v222 = vld [vmem:[#allocation2 + $0x10] sm:$0xff]
    %v223 = vld [vmem:[#allocation2 + $0x18] sm:$0xff]
    %v224 = vld [vmem:[#allocation2 + $0x20] sm:$0xff]
    %v225 = vld [vmem:[#allocation2 + $0x28] sm:$0xff]
    %v226 = vld [vmem:[#allocation2 + $0x30] sm:$0xff]
    %v227 = vld [vmem:[#allocation2 + $0x38] sm:$0xff]
    %v228 = vld [vmem:[#allocation5] sm:$0xff]
    %v229 = vld [vmem:[#allocation5 + $0x8] sm:$0xff]
    %v230 = vld [vmem:[#allocation5 + $0x10] sm:$0xff]
    %v231 = vld [vmem:[#allocation5 + $0x18] sm:$0xff]
    %v232 = vld [vmem:[#allocation5 + $0x20] sm:$0xff]
    %v233 = vld [vmem:[#allocation5 + $0x28] sm:$0xff]
    %v234 = vld [vmem:[#allocation5 + $0x30] sm:$0xff]
    %v235 = vld [vmem:[#allocation5 + $0x38] sm:$0xff]
    %v236 = vld [vmem:[#allocation7] sm:$0xff]
    %v237 = vld [vmem:[#allocation7 + $0x8] sm:$0xff]
    %v238 = vld [vmem:[#allocation7 + $0x10] sm:$0xff]
    %v239 = vld [vmem:[#allocation7 + $0x18] sm:$0xff]
    %v240 = vld [vmem:[#allocation7 + $0x20] sm:$0xff]
    %v241 = vld [vmem:[#allocation7 + $0x28] sm:$0xff]
    %v242 = vld [vmem:[#allocation7 + $0x30] sm:$0xff]
    %v243 = vld [vmem:[#allocation7 + $0x38] sm:$0xff]
    %v244 = vld [vmem:[#allocation11] sm:$0xff]
    %v245 = vld [vmem:[#allocation11 + $0x8] sm:$0xff]
    %v246 = vld [vmem:[#allocation11 + $0x10] sm:$0xff]
    %v247 = vld [vmem:[#allocation11 + $0x18] sm:$0xff]
    %v248 = vld [vmem:[#allocation11 + $0x20] sm:$0xff]
    %v249 = vld [vmem:[#allocation11 + $0x28] sm:$0xff]
    %v250 = vld [vmem:[#allocation11 + $0x30] sm:$0xff]
    %v251 = vld [vmem:[#allocation11 + $0x38] sm:$0xff]
    %v252 = vld [vmem:[#allocation11 + $0x40] sm:$0xff]
    %v253 = vld [vmem:[#allocation11 + $0x48] sm:$0xff]
    %v254 = vld [vmem:[#allocation11 + $0x50] sm:$0xff]
    %v255 = vld [vmem:[#allocation11 + $0x58] sm:$0xff]
    %v256 = vld [vmem:[#allocation11 + $0x60] sm:$0xff]
    %v257 = vld [vmem:[#allocation11 + $0x68] sm:$0xff]
    %v258 = vld [vmem:[#allocation11 + $0x70] sm:$0xff]
    %v259 = vld [vmem:[#allocation11 + $0x78] sm:$0xff]
    %v260 = vld [vmem:[#allocation13] sm:$0x1]
    %v262 = vperm.slane %v260, 0
    %264 = vmatpush.msra.mxu0 %v259
    %265 = vmatpush.msra.mxu0 %v258
    %266 = vmatpush.msra.mxu0 %v257
    %267 = vmatpush.msra.mxu0 %v256
    %268 = vmatpush.msra.mxu0 %v255
    %269 = vmatpush.msra.mxu0 %v254
    %270 = vmatpush.msra.mxu0 %v253
    %271 = vmatpush.msra.mxu0 %v252
    %272 = vmatpush.msra.mxu0 %v251
    %273 = vmatpush.msra.mxu0 %v250
    %274 = vmatpush.msra.mxu0 %v249
    %275 = vmatpush.msra.mxu0 %v248
    %276 = vmatpush.msra.mxu0 %v247
    %277 = vmatpush.msra.mxu0 %v246
    %278 = vmatpush.msra.mxu0 %v245
    %279 = vmatpush.msra.mxu0 %v244
    %280 = vmatmul.f32.gmra.mxu0 %v236
    %v281 = vpop.f32.mrf.mxu0
    %v282 = vadd.f32 %v262, %v281
    %283 = vmatmul.f32.gmra.mxu0 %v237
    %v284 = vpop.f32.mrf.mxu0
    %v285 = vadd.f32 %v262, %v284
    %286 = vmatmul.f32.gmra.mxu0 %v238
    %v287 = vpop.f32.mrf.mxu0
    %v288 = vadd.f32 %v262, %v287
    %289 = vmatmul.f32.gmra.mxu0 %v239
    %v290 = vpop.f32.mrf.mxu0
    %v291 = vadd.f32 %v262, %v290
    %292 = vmatmul.f32.gmra.mxu0 %v240
    %v293 = vpop.f32.mrf.mxu0
    %v294 = vadd.f32 %v262, %v293
    %295 = vmatmul.f32.gmra.mxu0 %v241
    %v296 = vpop.f32.mrf.mxu0
    %v297 = vadd.f32 %v262, %v296
    %298 = vmatmul.f32.gmra.mxu0 %v242
    %v299 = vpop.f32.mrf.mxu0
    %v300 = vadd.f32 %v262, %v299
    %301 = vmatmul.f32.gmra.mxu0 %v243
    %v302 = vpop.f32.mrf.mxu0
    %v303 = vadd.f32 %v262, %v302
    %304 = vdwg.mxu0
    %v305 = vld [vmem:[#allocation8] sm:$0xff]
    %v306 = vld [vmem:[#allocation8 + $0x8] sm:$0xff]
    %v307 = vld [vmem:[#allocation8 + $0x10] sm:$0xff]
    %v308 = vld [vmem:[#allocation8 + $0x18] sm:$0xff]
    %v309 = vld [vmem:[#allocation8 + $0x20] sm:$0xff]
    %v310 = vld [vmem:[#allocation8 + $0x28] sm:$0xff]
    %v311 = vld [vmem:[#allocation8 + $0x30] sm:$0xff]
    %v312 = vld [vmem:[#allocation8 + $0x38] sm:$0xff]
    %v313 = vld [vmem:[#allocation14] sm:$0xff]
    %v314 = vld [vmem:[#allocation14 + $0x8] sm:$0xff]
    %v315 = vld [vmem:[#allocation14 + $0x10] sm:$0xff]
    %v316 = vld [vmem:[#allocation14 + $0x18] sm:$0xff]
    %v317 = vld [vmem:[#allocation14 + $0x20] sm:$0xff]
    %v318 = vld [vmem:[#allocation14 + $0x28] sm:$0xff]
    %v319 = vld [vmem:[#allocation14 + $0x30] sm:$0xff]
    %v320 = vld [vmem:[#allocation14 + $0x38] sm:$0xff]
    %v321 = vld [vmem:[#allocation14 + $0x40] sm:$0xff]
    %v322 = vld [vmem:[#allocation14 + $0x48] sm:$0xff]
    %v323 = vld [vmem:[#allocation14 + $0x50] sm:$0xff]
    %v324 = vld [vmem:[#allocation14 + $0x58] sm:$0xff]
    %v325 = vld [vmem:[#allocation14 + $0x60] sm:$0xff]
    %v326 = vld [vmem:[#allocation14 + $0x68] sm:$0xff]
    %v327 = vld [vmem:[#allocation14 + $0x70] sm:$0xff]
    %v328 = vld [vmem:[#allocation14 + $0x78] sm:$0xff]
    %v329 = vld [vmem:[%s8] sm:$0x1]
    %v331 = vperm.slane %v329, 0
    %333 = vmatpush.msra.mxu0 %v328
    %334 = vmatpush.msra.mxu0 %v327
    %335 = vmatpush.msra.mxu0 %v326
    %336 = vmatpush.msra.mxu0 %v325
    %337 = vmatpush.msra.mxu0 %v324
    %338 = vmatpush.msra.mxu0 %v323
    %339 = vmatpush.msra.mxu0 %v322
    %340 = vmatpush.msra.mxu0 %v321
    %341 = vmatpush.msra.mxu0 %v320
    %342 = vmatpush.msra.mxu0 %v319
    %343 = vmatpush.msra.mxu0 %v318
    %344 = vmatpush.msra.mxu0 %v317
    %345 = vmatpush.msra.mxu0 %v316
    %346 = vmatpush.msra.mxu0 %v315
    %347 = vmatpush.msra.mxu0 %v314
    %348 = vmatpush.msra.mxu0 %v313
    %349 = vmatmul.f32.gmra.mxu0 %v305
    %v350 = vpop.f32.mrf.mxu0
    %v351 = vadd.f32 %v331, %v350
    %352 = vmatmul.f32.gmra.mxu0 %v306
    %v353 = vpop.f32.mrf.mxu0
    %v354 = vadd.f32 %v331, %v353
    %355 = vmatmul.f32.gmra.mxu0 %v307
    %v356 = vpop.f32.mrf.mxu0
    %v357 = vadd.f32 %v331, %v356
    %358 = vmatmul.f32.gmra.mxu0 %v308
    %v359 = vpop.f32.mrf.mxu0
    %v360 = vadd.f32 %v331, %v359
    %361 = vmatmul.f32.gmra.mxu0 %v309
    %v362 = vpop.f32.mrf.mxu0
    %v363 = vadd.f32 %v331, %v362
    %364 = vmatmul.f32.gmra.mxu0 %v310
    %v365 = vpop.f32.mrf.mxu0
    %v366 = vadd.f32 %v331, %v365
    %367 = vmatmul.f32.gmra.mxu0 %v311
    %v368 = vpop.f32.mrf.mxu0
    %v369 = vadd.f32 %v331, %v368
    %370 = vmatmul.f32.gmra.mxu0 %v312
    %v371 = vpop.f32.mrf.mxu0
    %v372 = vadd.f32 %v331, %v371
    %373 = vdwg.mxu0
    %v374 = vld [vmem:[#allocation10] sm:$0xff]
    %v375 = vld [vmem:[#allocation10 + $0x8] sm:$0xff]
    %v376 = vld [vmem:[#allocation10 + $0x10] sm:$0xff]
    %v377 = vld [vmem:[#allocation10 + $0x18] sm:$0xff]
    %v378 = vld [vmem:[#allocation10 + $0x20] sm:$0xff]
    %v379 = vld [vmem:[#allocation10 + $0x28] sm:$0xff]
    %v380 = vld [vmem:[#allocation10 + $0x30] sm:$0xff]
    %v381 = vld [vmem:[#allocation10 + $0x38] sm:$0xff]
    %v382 = vld [vmem:[#allocation16] sm:$0xff]
    %v383 = vld [vmem:[#allocation16 + $0x8] sm:$0xff]
    %v384 = vld [vmem:[#allocation16 + $0x10] sm:$0xff]
    %v385 = vld [vmem:[#allocation16 + $0x18] sm:$0xff]
    %v386 = vld [vmem:[#allocation16 + $0x20] sm:$0xff]
    %v387 = vld [vmem:[#allocation16 + $0x28] sm:$0xff]
    %v388 = vld [vmem:[#allocation16 + $0x30] sm:$0xff]
    %v389 = vld [vmem:[#allocation16 + $0x38] sm:$0xff]
    %v390 = vld [vmem:[#allocation16 + $0x40] sm:$0xff]
    %v391 = vld [vmem:[#allocation16 + $0x48] sm:$0xff]
    %v392 = vld [vmem:[#allocation16 + $0x50] sm:$0xff]
    %v393 = vld [vmem:[#allocation16 + $0x58] sm:$0xff]
    %v394 = vld [vmem:[#allocation16 + $0x60] sm:$0xff]
    %v395 = vld [vmem:[#allocation16 + $0x68] sm:$0xff]
    %v396 = vld [vmem:[#allocation16 + $0x70] sm:$0xff]
    %v397 = vld [vmem:[#allocation16 + $0x78] sm:$0xff]
    %v398 = vld [vmem:[%s10] sm:$0x1]
    %v400 = vperm.slane %v398, 0
    %402 = vmatpush.msra.mxu0 %v397
    %403 = vmatpush.msra.mxu0 %v396
    %404 = vmatpush.msra.mxu0 %v395
    %405 = vmatpush.msra.mxu0 %v394
    %406 = vmatpush.msra.mxu0 %v393
    %407 = vmatpush.msra.mxu0 %v392
    %408 = vmatpush.msra.mxu0 %v391
    %409 = vmatpush.msra.mxu0 %v390
    %410 = vmatpush.msra.mxu0 %v389
    %411 = vmatpush.msra.mxu0 %v388
    %412 = vmatpush.msra.mxu0 %v387
    %413 = vmatpush.msra.mxu0 %v386
    %414 = vmatpush.msra.mxu0 %v385
    %415 = vmatpush.msra.mxu0 %v384
    %416 = vmatpush.msra.mxu0 %v383
    %417 = vmatpush.msra.mxu0 %v382
    %418 = vmatmul.f32.gmra.mxu0 %v374
    %v419 = vpop.f32.mrf.mxu0
    %v420 = vadd.f32 %v400, %v419
    %421 = vmatmul.f32.gmra.mxu0 %v375
    %v422 = vpop.f32.mrf.mxu0
    %v423 = vadd.f32 %v400, %v422
    %424 = vmatmul.f32.gmra.mxu0 %v376
    %v425 = vpop.f32.mrf.mxu0
    %v426 = vadd.f32 %v400, %v425
    %427 = vmatmul.f32.gmra.mxu0 %v377
    %v428 = vpop.f32.mrf.mxu0
    %v429 = vadd.f32 %v400, %v428
    %430 = vmatmul.f32.gmra.mxu0 %v378
    %v431 = vpop.f32.mrf.mxu0
    %v432 = vadd.f32 %v400, %v431
    %433 = vmatmul.f32.gmra.mxu0 %v379
    %v434 = vpop.f32.mrf.mxu0
    %v435 = vadd.f32 %v400, %v434
    %436 = vmatmul.f32.gmra.mxu0 %v380
    %v437 = vpop.f32.mrf.mxu0
    %v438 = vadd.f32 %v400, %v437
    %439 = vmatmul.f32.gmra.mxu0 %v381
    %v440 = vpop.f32.mrf.mxu0
    %v441 = vadd.f32 %v400, %v440
    %442 = vdwg.mxu0
    %v443 = vmax.f32 %v282, 0.0
    %v444 = vmax.f32 %v285, 0.0
    %v445 = vmax.f32 %v288, 0.0
    %v446 = vmax.f32 %v291, 0.0
    %v447 = vmax.f32 %v294, 0.0
    %v448 = vmax.f32 %v297, 0.0
    %v449 = vmax.f32 %v300, 0.0
    %v450 = vmax.f32 %v303, 0.0
    %vm451 = vcmask 523264
    %v453 = vsel %vm451, %v220, 0
    %v456 = vsel %vm451, %v221, 0
    %v459 = vsel %vm451, %v222, 0
    %v462 = vsel %vm451, %v223, 0
    %v465 = vsel %vm451, %v224, 0
    %v468 = vsel %vm451, %v225, 0
    %v471 = vsel %vm451, %v226, 0
    %v474 = vsel %vm451, %v227, 0
    %476 = vmatpush.msra.mxu0 0.0
    %477 = vmatpush.msra.mxu0 0.0
    %478 = vmatpush.msra.mxu0 0.0
    %479 = vmatpush.msra.mxu0 0.0
    %480 = vmatpush.msra.mxu0 0.0
    %481 = vmatpush.msra.mxu0 0.0
    %482 = vmatpush.msra.mxu0 0.0
    %483 = vmatpush.msra.mxu0 0.0
    %484 = vmatpush.msra.mxu0 %v372
    %485 = vmatpush.msra.mxu0 %v369
    %486 = vmatpush.msra.mxu0 %v366
    %487 = vmatpush.msra.mxu0 %v363
    %488 = vmatpush.msra.mxu0 %v360
    %489 = vmatpush.msra.mxu0 %v357
    %490 = vmatpush.msra.mxu0 %v354
    %491 = vmatpush.msra.mxu0 %v351
    %492 = vmatmul.f32.gmra.mxu0 %v453
    %v493 = vpop.f32.mrf.mxu0
    %v494 = vadd.f32 0.0, %v493
    %495 = vmatmul.f32.gmra.mxu0 %v456
    %v496 = vpop.f32.mrf.mxu0
    %v497 = vadd.f32 0.0, %v496
    %498 = vmatmul.f32.gmra.mxu0 %v459
    %v499 = vpop.f32.mrf.mxu0
    %v500 = vadd.f32 0.0, %v499
    %501 = vmatmul.f32.gmra.mxu0 %v462
    %v502 = vpop.f32.mrf.mxu0
    %v503 = vadd.f32 0.0, %v502
    %504 = vmatmul.f32.gmra.mxu0 %v465
    %v505 = vpop.f32.mrf.mxu0
    %v506 = vadd.f32 0.0, %v505
    %507 = vmatmul.f32.gmra.mxu0 %v468
    %v508 = vpop.f32.mrf.mxu0
    %v509 = vadd.f32 0.0, %v508
    %510 = vmatmul.f32.gmra.mxu0 %v471
    %v511 = vpop.f32.mrf.mxu0
    %v512 = vadd.f32 0.0, %v511
    %513 = vmatmul.f32.gmra.mxu0 %v474
    %v514 = vpop.f32.mrf.mxu0
    %v515 = vadd.f32 0.0, %v514
    %516 = vdwg.mxu0
    %v517 = vmax.f32 %v494, 0.0
    %v518 = vmax.f32 %v497, 0.0
    %v519 = vmax.f32 %v500, 0.0
    %v520 = vmax.f32 %v503, 0.0
    %v521 = vmax.f32 %v506, 0.0
    %v522 = vmax.f32 %v509, 0.0
    %v523 = vmax.f32 %v512, 0.0
    %v524 = vmax.f32 %v515, 0.0
    %v525 = vadd.f32 %v443, %v517
    %v526 = vadd.f32 %v444, %v518
    %v527 = vadd.f32 %v445, %v519
    %v528 = vadd.f32 %v446, %v520
    %v529 = vadd.f32 %v447, %v521
    %v530 = vadd.f32 %v448, %v522
    %v531 = vadd.f32 %v449, %v523
    %v532 = vadd.f32 %v450, %v524
    %v534 = vsel %vm451, %v228, 0
    %v537 = vsel %vm451, %v229, 0
    %v540 = vsel %vm451, %v230, 0
    %v543 = vsel %vm451, %v231, 0
    %v546 = vsel %vm451, %v232, 0
    %v549 = vsel %vm451, %v233, 0
    %v552 = vsel %vm451, %v234, 0
    %v555 = vsel %vm451, %v235, 0
    %557 = vmatpush.msra.mxu0 0.0
    %558 = vmatpush.msra.mxu0 0.0
    %559 = vmatpush.msra.mxu0 0.0
    %560 = vmatpush.msra.mxu0 0.0
    %561 = vmatpush.msra.mxu0 0.0
    %562 = vmatpush.msra.mxu0 0.0
    %563 = vmatpush.msra.mxu0 0.0
    %564 = vmatpush.msra.mxu0 0.0
    %565 = vmatpush.msra.mxu0 %v441
    %566 = vmatpush.msra.mxu0 %v438
    %567 = vmatpush.msra.mxu0 %v435
    %568 = vmatpush.msra.mxu0 %v432
    %569 = vmatpush.msra.mxu0 %v429
    %570 = vmatpush.msra.mxu0 %v426
    %571 = vmatpush.msra.mxu0 %v423
    %572 = vmatpush.msra.mxu0 %v420
    %573 = vmatmul.f32.gmra.mxu0 %v534
    %v574 = vpop.f32.mrf.mxu0
    %v575 = vadd.f32 0.0, %v574
    %576 = vmatmul.f32.gmra.mxu0 %v537
    %v577 = vpop.f32.mrf.mxu0
    %v578 = vadd.f32 0.0, %v577
    %579 = vmatmul.f32.gmra.mxu0 %v540
    %v580 = vpop.f32.mrf.mxu0
    %v581 = vadd.f32 0.0, %v580
    %582 = vmatmul.f32.gmra.mxu0 %v543
    %v583 = vpop.f32.mrf.mxu0
    %v584 = vadd.f32 0.0, %v583
    %585 = vmatmul.f32.gmra.mxu0 %v546
    %v586 = vpop.f32.mrf.mxu0
    %v587 = vadd.f32 0.0, %v586
    %588 = vmatmul.f32.gmra.mxu0 %v549
    %v589 = vpop.f32.mrf.mxu0
    %v590 = vadd.f32 0.0, %v589
    %591 = vmatmul.f32.gmra.mxu0 %v552
    %v592 = vpop.f32.mrf.mxu0
    %v593 = vadd.f32 0.0, %v592
    %594 = vmatmul.f32.gmra.mxu0 %v555
    %v595 = vpop.f32.mrf.mxu0
    %v596 = vadd.f32 0.0, %v595
    %597 = vdwg.mxu0
    %v598 = vmax.f32 %v575, 0.0
    %v599 = vmax.f32 %v578, 0.0
    %v600 = vmax.f32 %v581, 0.0
    %v601 = vmax.f32 %v584, 0.0
    %v602 = vmax.f32 %v587, 0.0
    %v603 = vmax.f32 %v590, 0.0
    %v604 = vmax.f32 %v593, 0.0
    %v605 = vmax.f32 %v596, 0.0
    %v606 = vadd.f32 %v525, %v598
    %v607 = vadd.f32 %v526, %v599
    %v608 = vadd.f32 %v527, %v600
    %v609 = vadd.f32 %v528, %v601
    %v610 = vadd.f32 %v529, %v602
    %v611 = vadd.f32 %v530, %v603
    %v612 = vadd.f32 %v531, %v604
    %v613 = vadd.f32 %v532, %v605
    %v614 = vld [vmem:[#allocation17] sm:$0xff]
    %v615 = vld [vmem:[#allocation17 + $0x8] sm:$0xff]
    %v616 = vld [vmem:[#allocation17 + $0x10] sm:$0xff]
    %v617 = vld [vmem:[#allocation17 + $0x18] sm:$0xff]
    %v618 = vld [vmem:[#allocation17 + $0x20] sm:$0xff]
    %v619 = vld [vmem:[#allocation17 + $0x28] sm:$0xff]
    %v620 = vld [vmem:[#allocation17 + $0x30] sm:$0xff]
    %v621 = vld [vmem:[#allocation17 + $0x38] sm:$0xff]
    %v622 = vld [vmem:[#allocation17 + $0x40] sm:$0xff]
    %v623 = vld [vmem:[#allocation17 + $0x48] sm:$0xff]
    %v624 = vld [vmem:[#allocation17 + $0x50] sm:$0xff]
    %v625 = vld [vmem:[#allocation17 + $0x58] sm:$0xff]
    %v626 = vld [vmem:[#allocation17 + $0x60] sm:$0xff]
    %v627 = vld [vmem:[#allocation17 + $0x68] sm:$0xff]
    %v628 = vld [vmem:[#allocation17 + $0x70] sm:$0xff]
    %v629 = vld [vmem:[#allocation17 + $0x78] sm:$0xff]
    %v630 = vld [vmem:[#allocation17 + $0x80] sm:$0xff]
    %v631 = vld [vmem:[#allocation17 + $0x88] sm:$0xff]
    %v632 = vld [vmem:[#allocation17 + $0x90] sm:$0xff]
    %v633 = vld [vmem:[#allocation17 + $0x98] sm:$0xff]
    %v634 = vld [vmem:[#allocation17 + $0xa0] sm:$0xff]
    %v635 = vld [vmem:[#allocation17 + $0xa8] sm:$0xff]
    %v636 = vld [vmem:[#allocation17 + $0xb0] sm:$0xff]
    %v637 = vld [vmem:[#allocation17 + $0xb8] sm:$0xff]
    %v638 = vld [vmem:[#allocation17 + $0xc0] sm:$0xff]
    %v639 = vld [vmem:[#allocation17 + $0xc8] sm:$0xff]
    %v640 = vld [vmem:[#allocation17 + $0xd0] sm:$0xff]
    %v641 = vld [vmem:[#allocation17 + $0xd8] sm:$0xff]
    %v642 = vld [vmem:[#allocation17 + $0xe0] sm:$0xff]
    %v643 = vld [vmem:[#allocation17 + $0xe8] sm:$0xff]
    %v644 = vld [vmem:[#allocation17 + $0xf0] sm:$0xff]
    %v645 = vld [vmem:[#allocation17 + $0xf8] sm:$0xff]
    %v646 = vld [vmem:[#allocation17 + $0x100] sm:$0xff]
    %v647 = vld [vmem:[#allocation17 + $0x108] sm:$0xff]
    %v648 = vld [vmem:[#allocation17 + $0x110] sm:$0xff]
    %v649 = vld [vmem:[#allocation17 + $0x118] sm:$0xff]
    %v650 = vld [vmem:[#allocation17 + $0x120] sm:$0xff]
    %v651 = vld [vmem:[#allocation17 + $0x128] sm:$0xff]
    %v652 = vld [vmem:[#allocation17 + $0x130] sm:$0xff]
    %v653 = vld [vmem:[#allocation17 + $0x138] sm:$0xff]
    %v654 = vld [vmem:[#allocation17 + $0x140] sm:$0xff]
    %v655 = vld [vmem:[#allocation17 + $0x148] sm:$0xff]
    %v656 = vld [vmem:[#allocation17 + $0x150] sm:$0xff]
    %v657 = vld [vmem:[#allocation17 + $0x158] sm:$0xff]
    %v658 = vld [vmem:[#allocation17 + $0x160] sm:$0xff]
    %v659 = vld [vmem:[#allocation17 + $0x168] sm:$0xff]
    %v660 = vld [vmem:[#allocation17 + $0x170] sm:$0xff]
    %v661 = vld [vmem:[#allocation17 + $0x178] sm:$0xff]
    %v662 = vld [vmem:[%s12] sm:$0x7]
    %v664 = vperm.slane %v662, 0
    %v665 = vperm.slane %v662, 1
    %v666 = vperm.slane %v662, 2
    %670 = vmatpush.msra.mxu0 %v659
    %671 = vmatpush.msra.mxu0 %v656
    %672 = vmatpush.msra.mxu0 %v653
    %673 = vmatpush.msra.mxu0 %v650
    %674 = vmatpush.msra.mxu0 %v647
    %675 = vmatpush.msra.mxu0 %v644
    %676 = vmatpush.msra.mxu0 %v641
    %677 = vmatpush.msra.mxu0 %v638
    %678 = vmatpush.msra.mxu0 %v635
    %679 = vmatpush.msra.mxu0 %v632
    %680 = vmatpush.msra.mxu0 %v629
    %681 = vmatpush.msra.mxu0 %v626
    %682 = vmatpush.msra.mxu0 %v623
    %683 = vmatpush.msra.mxu0 %v620
    %684 = vmatpush.msra.mxu0 %v617
    %685 = vmatpush.msra.mxu0 %v614
    %686 = vmatmul.f32.gmra.mxu0 %v606
    %v687 = vpop.f32.mrf.mxu0
    %v688 = vadd.f32 %v664, %v687
    %689 = vmatmul.f32.gmra.mxu0 %v607
    %v690 = vpop.f32.mrf.mxu0
    %v691 = vadd.f32 %v664, %v690
    %692 = vmatmul.f32.gmra.mxu0 %v608
    %v693 = vpop.f32.mrf.mxu0
    %v694 = vadd.f32 %v664, %v693
    %695 = vmatmul.f32.gmra.mxu0 %v609
    %v696 = vpop.f32.mrf.mxu0
    %v697 = vadd.f32 %v664, %v696
    %698 = vmatmul.f32.gmra.mxu0 %v610
    %v699 = vpop.f32.mrf.mxu0
    %v700 = vadd.f32 %v664, %v699
    %701 = vmatmul.f32.gmra.mxu0 %v611
    %v702 = vpop.f32.mrf.mxu0
    %v703 = vadd.f32 %v664, %v702
    %704 = vmatmul.f32.gmra.mxu0 %v612
    %v705 = vpop.f32.mrf.mxu0
    %v706 = vadd.f32 %v664, %v705
    %707 = vmatmul.f32.gmra.mxu0 %v613
    %v708 = vpop.f32.mrf.mxu0
    %v709 = vadd.f32 %v664, %v708
    %710 = vdwg.mxu0
    %711 = vmatpush.msra.mxu0 %v660
    %712 = vmatpush.msra.mxu0 %v657
    %713 = vmatpush.msra.mxu0 %v654
    %714 = vmatpush.msra.mxu0 %v651
    %715 = vmatpush.msra.mxu0 %v648
    %716 = vmatpush.msra.mxu0 %v645
    %717 = vmatpush.msra.mxu0 %v642
    %718 = vmatpush.msra.mxu0 %v639
    %719 = vmatpush.msra.mxu0 %v636
    %720 = vmatpush.msra.mxu0 %v633
    %721 = vmatpush.msra.mxu0 %v630
    %722 = vmatpush.msra.mxu0 %v627
    %723 = vmatpush.msra.mxu0 %v624
    %724 = vmatpush.msra.mxu0 %v621
    %725 = vmatpush.msra.mxu0 %v618
    %726 = vmatpush.msra.mxu0 %v615
    %727 = vmatmul.f32.gmra.mxu0 %v606
    %v728 = vpop.f32.mrf.mxu0
    %v729 = vadd.f32 %v665, %v728
    %730 = vmatmul.f32.gmra.mxu0 %v607
    %v731 = vpop.f32.mrf.mxu0
    %v732 = vadd.f32 %v665, %v731
    %733 = vmatmul.f32.gmra.mxu0 %v608
    %v734 = vpop.f32.mrf.mxu0
    %v735 = vadd.f32 %v665, %v734
    %736 = vmatmul.f32.gmra.mxu0 %v609
    %v737 = vpop.f32.mrf.mxu0
    %v738 = vadd.f32 %v665, %v737
    %739 = vmatmul.f32.gmra.mxu0 %v610
    %v740 = vpop.f32.mrf.mxu0
    %v741 = vadd.f32 %v665, %v740
    %742 = vmatmul.f32.gmra.mxu0 %v611
    %v743 = vpop.f32.mrf.mxu0
    %v744 = vadd.f32 %v665, %v743
    %745 = vmatmul.f32.gmra.mxu0 %v612
    %v746 = vpop.f32.mrf.mxu0
    %v747 = vadd.f32 %v665, %v746
    %748 = vmatmul.f32.gmra.mxu0 %v613
    %v749 = vpop.f32.mrf.mxu0
    %v750 = vadd.f32 %v665, %v749
    %751 = vdwg.mxu0
    %752 = vmatpush.msra.mxu0 %v661
    %753 = vmatpush.msra.mxu0 %v658
    %754 = vmatpush.msra.mxu0 %v655
    %755 = vmatpush.msra.mxu0 %v652
    %756 = vmatpush.msra.mxu0 %v649
    %757 = vmatpush.msra.mxu0 %v646
    %758 = vmatpush.msra.mxu0 %v643
    %759 = vmatpush.msra.mxu0 %v640
    %760 = vmatpush.msra.mxu0 %v637
    %761 = vmatpush.msra.mxu0 %v634
    %762 = vmatpush.msra.mxu0 %v631
    %763 = vmatpush.msra.mxu0 %v628
    %764 = vmatpush.msra.mxu0 %v625
    %765 = vmatpush.msra.mxu0 %v622
    %766 = vmatpush.msra.mxu0 %v619
    %767 = vmatpush.msra.mxu0 %v616
    %768 = vmatmul.f32.gmra.mxu0 %v606
    %v769 = vpop.f32.mrf.mxu0
    %v770 = vadd.f32 %v666, %v769
    %771 = vmatmul.f32.gmra.mxu0 %v607
    %v772 = vpop.f32.mrf.mxu0
    %v773 = vadd.f32 %v666, %v772
    %774 = vmatmul.f32.gmra.mxu0 %v608
    %v775 = vpop.f32.mrf.mxu0
    %v776 = vadd.f32 %v666, %v775
    %777 = vmatmul.f32.gmra.mxu0 %v609
    %v778 = vpop.f32.mrf.mxu0
    %v779 = vadd.f32 %v666, %v778
    %780 = vmatmul.f32.gmra.mxu0 %v610
    %v781 = vpop.f32.mrf.mxu0
    %v782 = vadd.f32 %v666, %v781
    %783 = vmatmul.f32.gmra.mxu0 %v611
    %v784 = vpop.f32.mrf.mxu0
    %v785 = vadd.f32 %v666, %v784
    %786 = vmatmul.f32.gmra.mxu0 %v612
    %v787 = vpop.f32.mrf.mxu0
    %v788 = vadd.f32 %v666, %v787
    %789 = vmatmul.f32.gmra.mxu0 %v613
    %v790 = vpop.f32.mrf.mxu0
    %v791 = vadd.f32 %v666, %v790
    %792 = vdwg.mxu0
    %v793 = vmax.f32 %v688, 0.0
    %v794 = vmax.f32 %v691, 0.0
    %v795 = vmax.f32 %v694, 0.0
    %v796 = vmax.f32 %v697, 0.0
    %v797 = vmax.f32 %v700, 0.0
    %v798 = vmax.f32 %v703, 0.0
    %v799 = vmax.f32 %v706, 0.0
    %v800 = vmax.f32 %v709, 0.0
    %801 = vmatpush.msra.mxu0 0.0
    %802 = vmatpush.msra.mxu0 0.0
    %803 = vmatpush.msra.mxu0 0.0
    %804 = vmatpush.msra.mxu0 0.0
    %805 = vmatpush.msra.mxu0 0.0
    %806 = vmatpush.msra.mxu0 0.0
    %807 = vmatpush.msra.mxu0 0.0
    %808 = vmatpush.msra.mxu0 0.0
    %809 = vmatpush.msra.mxu0 %v750
    %810 = vmatpush.msra.mxu0 %v747
    %811 = vmatpush.msra.mxu0 %v744
    %812 = vmatpush.msra.mxu0 %v741
    %813 = vmatpush.msra.mxu0 %v738
    %814 = vmatpush.msra.mxu0 %v735
    %815 = vmatpush.msra.mxu0 %v732
    %816 = vmatpush.msra.mxu0 %v729
    %817 = vmatmul.f32.gmra.mxu0 %v453
    %v818 = vpop.f32.mrf.mxu0
    %v819 = vadd.f32 0.0, %v818
    %820 = vmatmul.f32.gmra.mxu0 %v456
    %v821 = vpop.f32.mrf.mxu0
    %v822 = vadd.f32 0.0, %v821
    %823 = vmatmul.f32.gmra.mxu0 %v459
    %v824 = vpop.f32.mrf.mxu0
    %v825 = vadd.f32 0.0, %v824
    %826 = vmatmul.f32.gmra.mxu0 %v462
    %v827 = vpop.f32.mrf.mxu0
    %v828 = vadd.f32 0.0, %v827
    %829 = vmatmul.f32.gmra.mxu0 %v465
    %v830 = vpop.f32.mrf.mxu0
    %v831 = vadd.f32 0.0, %v830
    %832 = vmatmul.f32.gmra.mxu0 %v468
    %v833 = vpop.f32.mrf.mxu0
    %v834 = vadd.f32 0.0, %v833
    %835 = vmatmul.f32.gmra.mxu0 %v471
    %v836 = vpop.f32.mrf.mxu0
    %v837 = vadd.f32 0.0, %v836
    %838 = vmatmul.f32.gmra.mxu0 %v474
    %v839 = vpop.f32.mrf.mxu0
    %v840 = vadd.f32 0.0, %v839
    %841 = vdwg.mxu0
    %v842 = vmax.f32 %v819, 0.0
    %v843 = vmax.f32 %v822, 0.0
    %v844 = vmax.f32 %v825, 0.0
    %v845 = vmax.f32 %v828, 0.0
    %v846 = vmax.f32 %v831, 0.0
    %v847 = vmax.f32 %v834, 0.0
    %v848 = vmax.f32 %v837, 0.0
    %v849 = vmax.f32 %v840, 0.0
    %v850 = vadd.f32 %v793, %v842
    %v851 = vadd.f32 %v794, %v843
    %v852 = vadd.f32 %v795, %v844
    %v853 = vadd.f32 %v796, %v845
    %v854 = vadd.f32 %v797, %v846
    %v855 = vadd.f32 %v798, %v847
    %v856 = vadd.f32 %v799, %v848
    %v857 = vadd.f32 %v800, %v849
    %858 = vmatpush.msra.mxu0 0.0
    %859 = vmatpush.msra.mxu0 0.0
    %860 = vmatpush.msra.mxu0 0.0
    %861 = vmatpush.msra.mxu0 0.0
    %862 = vmatpush.msra.mxu0 0.0
    %863 = vmatpush.msra.mxu0 0.0
    %864 = vmatpush.msra.mxu0 0.0
    %865 = vmatpush.msra.mxu0 0.0
    %866 = vmatpush.msra.mxu0 %v791
    %867 = vmatpush.msra.mxu0 %v788
    %868 = vmatpush.msra.mxu0 %v785
    %869 = vmatpush.msra.mxu0 %v782
    %870 = vmatpush.msra.mxu0 %v779
    %871 = vmatpush.msra.mxu0 %v776
    %872 = vmatpush.msra.mxu0 %v773
    %873 = vmatpush.msra.mxu0 %v770
    %874 = vmatmul.f32.gmra.mxu0 %v534
    %v875 = vpop.f32.mrf.mxu0
    %v876 = vadd.f32 0.0, %v875
    %877 = vmatmul.f32.gmra.mxu0 %v537
    %v878 = vpop.f32.mrf.mxu0
    %v879 = vadd.f32 0.0, %v878
    %880 = vmatmul.f32.gmra.mxu0 %v540
    %v881 = vpop.f32.mrf.mxu0
    %v882 = vadd.f32 0.0, %v881
    %883 = vmatmul.f32.gmra.mxu0 %v543
    %v884 = vpop.f32.mrf.mxu0
    %v885 = vadd.f32 0.0, %v884
    %886 = vmatmul.f32.gmra.mxu0 %v546
    %v887 = vpop.f32.mrf.mxu0
    %v888 = vadd.f32 0.0, %v887
    %889 = vmatmul.f32.gmra.mxu0 %v549
    %v890 = vpop.f32.mrf.mxu0
    %v891 = vadd.f32 0.0, %v890
    %892 = vmatmul.f32.gmra.mxu0 %v552
    %v893 = vpop.f32.mrf.mxu0
    %v894 = vadd.f32 0.0, %v893
    %895 = vmatmul.f32.gmra.mxu0 %v555
    %v896 = vpop.f32.mrf.mxu0
    %v897 = vadd.f32 0.0, %v896
    %898 = vdwg.mxu0
    %v899 = vmax.f32 %v876, 0.0
    %v900 = vmax.f32 %v879, 0.0
    %v901 = vmax.f32 %v882, 0.0
    %v902 = vmax.f32 %v885, 0.0
    %v903 = vmax.f32 %v888, 0.0
    %v904 = vmax.f32 %v891, 0.0
    %v905 = vmax.f32 %v894, 0.0
    %v906 = vmax.f32 %v897, 0.0
    %v907 = vadd.f32 %v850, %v899
    %v908 = vadd.f32 %v851, %v900
    %v909 = vadd.f32 %v852, %v901
    %v910 = vadd.f32 %v853, %v902
    %v911 = vadd.f32 %v854, %v903
    %v912 = vadd.f32 %v855, %v904
    %v913 = vadd.f32 %v856, %v905
    %v914 = vadd.f32 %v857, %v906
    %v915 = vld [vmem:[#allocation19] sm:$0xff]
    %v916 = vld [vmem:[#allocation19 + $0x8] sm:$0xff]
    %v917 = vld [vmem:[#allocation19 + $0x10] sm:$0xff]
    %v918 = vld [vmem:[#allocation19 + $0x18] sm:$0xff]
    %v919 = vld [vmem:[#allocation19 + $0x20] sm:$0xff]
    %v920 = vld [vmem:[#allocation19 + $0x28] sm:$0xff]
    %v921 = vld [vmem:[#allocation19 + $0x30] sm:$0xff]
    %v922 = vld [vmem:[#allocation19 + $0x38] sm:$0xff]
    %v923 = vld [vmem:[#allocation19 + $0x40] sm:$0xff]
    %v924 = vld [vmem:[#allocation19 + $0x48] sm:$0xff]
    %v925 = vld [vmem:[#allocation19 + $0x50] sm:$0xff]
    %v926 = vld [vmem:[#allocation19 + $0x58] sm:$0xff]
    %v927 = vld [vmem:[#allocation19 + $0x60] sm:$0xff]
    %v928 = vld [vmem:[#allocation19 + $0x68] sm:$0xff]
    %v929 = vld [vmem:[#allocation19 + $0x70] sm:$0xff]
    %v930 = vld [vmem:[#allocation19 + $0x78] sm:$0xff]
    %v931 = vld [vmem:[#allocation19 + $0x80] sm:$0xff]
    %v932 = vld [vmem:[#allocation19 + $0x88] sm:$0xff]
    %v933 = vld [vmem:[#allocation19 + $0x90] sm:$0xff]
    %v934 = vld [vmem:[#allocation19 + $0x98] sm:$0xff]
    %v935 = vld [vmem:[#allocation19 + $0xa0] sm:$0xff]
    %v936 = vld [vmem:[#allocation19 + $0xa8] sm:$0xff]
    %v937 = vld [vmem:[#allocation19 + $0xb0] sm:$0xff]
    %v938 = vld [vmem:[#allocation19 + $0xb8] sm:$0xff]
    %v939 = vld [vmem:[#allocation19 + $0xc0] sm:$0xff]
    %v940 = vld [vmem:[#allocation19 + $0xc8] sm:$0xff]
    %v941 = vld [vmem:[#allocation19 + $0xd0] sm:$0xff]
    %v942 = vld [vmem:[#allocation19 + $0xd8] sm:$0xff]
    %v943 = vld [vmem:[#allocation19 + $0xe0] sm:$0xff]
    %v944 = vld [vmem:[#allocation19 + $0xe8] sm:$0xff]
    %v945 = vld [vmem:[#allocation19 + $0xf0] sm:$0xff]
    %v946 = vld [vmem:[#allocation19 + $0xf8] sm:$0xff]
    %v947 = vld [vmem:[#allocation19 + $0x100] sm:$0xff]
    %v948 = vld [vmem:[#allocation19 + $0x108] sm:$0xff]
    %v949 = vld [vmem:[#allocation19 + $0x110] sm:$0xff]
    %v950 = vld [vmem:[#allocation19 + $0x118] sm:$0xff]
    %v951 = vld [vmem:[#allocation19 + $0x120] sm:$0xff]
    %v952 = vld [vmem:[#allocation19 + $0x128] sm:$0xff]
    %v953 = vld [vmem:[#allocation19 + $0x130] sm:$0xff]
    %v954 = vld [vmem:[#allocation19 + $0x138] sm:$0xff]
    %v955 = vld [vmem:[#allocation19 + $0x140] sm:$0xff]
    %v956 = vld [vmem:[#allocation19 + $0x148] sm:$0xff]
    %v957 = vld [vmem:[#allocation19 + $0x150] sm:$0xff]
    %v958 = vld [vmem:[#allocation19 + $0x158] sm:$0xff]
    %v959 = vld [vmem:[#allocation19 + $0x160] sm:$0xff]
    %v960 = vld [vmem:[#allocation19 + $0x168] sm:$0xff]
    %v961 = vld [vmem:[#allocation19 + $0x170] sm:$0xff]
    %v962 = vld [vmem:[#allocation19 + $0x178] sm:$0xff]
    %v963 = vld [vmem:[%s14] sm:$0x7]
    %v965 = vperm.slane %v963, 0
    %v966 = vperm.slane %v963, 1
    %v967 = vperm.slane %v963, 2
    %971 = vmatpush.msra.mxu0 %v960
    %972 = vmatpush.msra.mxu0 %v957
    %973 = vmatpush.msra.mxu0 %v954
    %974 = vmatpush.msra.mxu0 %v951
    %975 = vmatpush.msra.mxu0 %v948
    %976 = vmatpush.msra.mxu0 %v945
    %977 = vmatpush.msra.mxu0 %v942
    %978 = vmatpush.msra.mxu0 %v939
    %979 = vmatpush.msra.mxu0 %v936
    %980 = vmatpush.msra.mxu0 %v933
    %981 = vmatpush.msra.mxu0 %v930
    %982 = vmatpush.msra.mxu0 %v927
    %983 = vmatpush.msra.mxu0 %v924
    %984 = vmatpush.msra.mxu0 %v921
    %985 = vmatpush.msra.mxu0 %v918
    %986 = vmatpush.msra.mxu0 %v915
    %987 = vmatmul.f32.gmra.mxu0 %v907
    %v988 = vpop.f32.mrf.mxu0
    %v989 = vadd.f32 %v965, %v988
    %990 = vmatmul.f32.gmra.mxu0 %v908
    %v991 = vpop.f32.mrf.mxu0
    %v992 = vadd.f32 %v965, %v991
    %993 = vmatmul.f32.gmra.mxu0 %v909
    %v994 = vpop.f32.mrf.mxu0
    %v995 = vadd.f32 %v965, %v994
    %996 = vmatmul.f32.gmra.mxu0 %v910
    %v997 = vpop.f32.mrf.mxu0
    %v998 = vadd.f32 %v965, %v997
    %999 = vmatmul.f32.gmra.mxu0 %v911
    %v1000 = vpop.f32.mrf.mxu0
    %v1001 = vadd.f32 %v965, %v1000
    %1002 = vmatmul.f32.gmra.mxu0 %v912
    %v1003 = vpop.f32.mrf.mxu0
    %v1004 = vadd.f32 %v965, %v1003
    %1005 = vmatmul.f32.gmra.mxu0 %v913
    %v1006 = vpop.f32.mrf.mxu0
    %v1007 = vadd.f32 %v965, %v1006
    %1008 = vmatmul.f32.gmra.mxu0 %v914
    %v1009 = vpop.f32.mrf.mxu0
    %v1010 = vadd.f32 %v965, %v1009
    %1011 = vdwg.mxu0
    %1012 = vmatpush.msra.mxu0 %v961
    %1013 = vmatpush.msra.mxu0 %v958
    %1014 = vmatpush.msra.mxu0 %v955
    %1015 = vmatpush.msra.mxu0 %v952
    %1016 = vmatpush.msra.mxu0 %v949
    %1017 = vmatpush.msra.mxu0 %v946
    %1018 = vmatpush.msra.mxu0 %v943
    %1019 = vmatpush.msra.mxu0 %v940
    %1020 = vmatpush.msra.mxu0 %v937
    %1021 = vmatpush.msra.mxu0 %v934
    %1022 = vmatpush.msra.mxu0 %v931
    %1023 = vmatpush.msra.mxu0 %v928
    %1024 = vmatpush.msra.mxu0 %v925
    %1025 = vmatpush.msra.mxu0 %v922
    %1026 = vmatpush.msra.mxu0 %v919
    %1027 = vmatpush.msra.mxu0 %v916
    %1028 = vmatmul.f32.gmra.mxu0 %v907
    %v1029 = vpop.f32.mrf.mxu0
    %v1030 = vadd.f32 %v966, %v1029
    %1031 = vmatmul.f32.gmra.mxu0 %v908
    %v1032 = vpop.f32.mrf.mxu0
    %v1033 = vadd.f32 %v966, %v1032
    %1034 = vmatmul.f32.gmra.mxu0 %v909
    %v1035 = vpop.f32.mrf.mxu0
    %v1036 = vadd.f32 %v966, %v1035
    %1037 = vmatmul.f32.gmra.mxu0 %v910
    %v1038 = vpop.f32.mrf.mxu0
    %v1039 = vadd.f32 %v966, %v1038
    %1040 = vmatmul.f32.gmra.mxu0 %v911
    %v1041 = vpop.f32.mrf.mxu0
    %v1042 = vadd.f32 %v966, %v1041
    %1043 = vmatmul.f32.gmra.mxu0 %v912
    %v1044 = vpop.f32.mrf.mxu0
    %v1045 = vadd.f32 %v966, %v1044
    %1046 = vmatmul.f32.gmra.mxu0 %v913
    %v1047 = vpop.f32.mrf.mxu0
    %v1048 = vadd.f32 %v966, %v1047
    %1049 = vmatmul.f32.gmra.mxu0 %v914
    %v1050 = vpop.f32.mrf.mxu0
    %v1051 = vadd.f32 %v966, %v1050
    %1052 = vdwg.mxu0
    %1053 = vmatpush.msra.mxu0 %v962
    %1054 = vmatpush.msra.mxu0 %v959
    %1055 = vmatpush.msra.mxu0 %v956
    %1056 = vmatpush.msra.mxu0 %v953
    %1057 = vmatpush.msra.mxu0 %v950
    %1058 = vmatpush.msra.mxu0 %v947
    %1059 = vmatpush.msra.mxu0 %v944
    %1060 = vmatpush.msra.mxu0 %v941
    %1061 = vmatpush.msra.mxu0 %v938
    %1062 = vmatpush.msra.mxu0 %v935
    %1063 = vmatpush.msra.mxu0 %v932
    %1064 = vmatpush.msra.mxu0 %v929
    %1065 = vmatpush.msra.mxu0 %v926
    %1066 = vmatpush.msra.mxu0 %v923
    %1067 = vmatpush.msra.mxu0 %v920
    %1068 = vmatpush.msra.mxu0 %v917
    %1069 = vmatmul.f32.gmra.mxu0 %v907
    %v1070 = vpop.f32.mrf.mxu0
    %v1071 = vadd.f32 %v967, %v1070
    %1072 = vmatmul.f32.gmra.mxu0 %v908
    %v1073 = vpop.f32.mrf.mxu0
    %v1074 = vadd.f32 %v967, %v1073
    %1075 = vmatmul.f32.gmra.mxu0 %v909
    %v1076 = vpop.f32.mrf.mxu0
    %v1077 = vadd.f32 %v967, %v1076
    %1078 = vmatmul.f32.gmra.mxu0 %v910
    %v1079 = vpop.f32.mrf.mxu0
    %v1080 = vadd.f32 %v967, %v1079
    %1081 = vmatmul.f32.gmra.mxu0 %v911
    %v1082 = vpop.f32.mrf.mxu0
    %v1083 = vadd.f32 %v967, %v1082
    %1084 = vmatmul.f32.gmra.mxu0 %v912
    %v1085 = vpop.f32.mrf.mxu0
    %v1086 = vadd.f32 %v967, %v1085
    %1087 = vmatmul.f32.gmra.mxu0 %v913
    %v1088 = vpop.f32.mrf.mxu0
    %v1089 = vadd.f32 %v967, %v1088
    %1090 = vmatmul.f32.gmra.mxu0 %v914
    %v1091 = vpop.f32.mrf.mxu0
    %v1092 = vadd.f32 %v967, %v1091
    %1093 = vdwg.mxu0
    %1094 = vmatpush.msra.mxu0 0.0
    %1095 = vmatpush.msra.mxu0 0.0
    %1096 = vmatpush.msra.mxu0 0.0
    %1097 = vmatpush.msra.mxu0 0.0
    %1098 = vmatpush.msra.mxu0 0.0
    %1099 = vmatpush.msra.mxu0 0.0
    %1100 = vmatpush.msra.mxu0 0.0
    %1101 = vmatpush.msra.mxu0 0.0
    %1102 = vmatpush.msra.mxu0 %v1051
    %1103 = vmatpush.msra.mxu0 %v1048
    %1104 = vmatpush.msra.mxu0 %v1045
    %1105 = vmatpush.msra.mxu0 %v1042
    %1106 = vmatpush.msra.mxu0 %v1039
    %1107 = vmatpush.msra.mxu0 %v1036
    %1108 = vmatpush.msra.mxu0 %v1033
    %1109 = vmatpush.msra.mxu0 %v1030
    %1110 = vmatmul.f32.gmra.mxu0 %v453
    %v1111 = vpop.f32.mrf.mxu0
    %v1112 = vadd.f32 0.0, %v1111
    %1113 = vmatmul.f32.gmra.mxu0 %v456
    %v1114 = vpop.f32.mrf.mxu0
    %v1115 = vadd.f32 0.0, %v1114
    %1116 = vmatmul.f32.gmra.mxu0 %v459
    %v1117 = vpop.f32.mrf.mxu0
    %v1118 = vadd.f32 0.0, %v1117
    %1119 = vmatmul.f32.gmra.mxu0 %v462
    %v1120 = vpop.f32.mrf.mxu0
    %v1121 = vadd.f32 0.0, %v1120
    %1122 = vmatmul.f32.gmra.mxu0 %v465
    %v1123 = vpop.f32.mrf.mxu0
    %v1124 = vadd.f32 0.0, %v1123
    %1125 = vmatmul.f32.gmra.mxu0 %v468
    %v1126 = vpop.f32.mrf.mxu0
    %v1127 = vadd.f32 0.0, %v1126
    %1128 = vmatmul.f32.gmra.mxu0 %v471
    %v1129 = vpop.f32.mrf.mxu0
    %v1130 = vadd.f32 0.0, %v1129
    %1131 = vmatmul.f32.gmra.mxu0 %v474
    %v1132 = vpop.f32.mrf.mxu0
    %v1133 = vadd.f32 0.0, %v1132
    %1134 = vdwg.mxu0
    %v1135 = vadd.f32 %v989, %v1112
    %v1136 = vadd.f32 %v992, %v1115
    %v1137 = vadd.f32 %v995, %v1118
    %v1138 = vadd.f32 %v998, %v1121
    %v1139 = vadd.f32 %v1001, %v1124
    %v1140 = vadd.f32 %v1004, %v1127
    %v1141 = vadd.f32 %v1007, %v1130
    %v1142 = vadd.f32 %v1010, %v1133
    %1143 = vmatpush.msra.mxu0 0.0
    %1144 = vmatpush.msra.mxu0 0.0
    %1145 = vmatpush.msra.mxu0 0.0
    %1146 = vmatpush.msra.mxu0 0.0
    %1147 = vmatpush.msra.mxu0 0.0
    %1148 = vmatpush.msra.mxu0 0.0
    %1149 = vmatpush.msra.mxu0 0.0
    %1150 = vmatpush.msra.mxu0 0.0
    %1151 = vmatpush.msra.mxu0 %v1092
    %1152 = vmatpush.msra.mxu0 %v1089
    %1153 = vmatpush.msra.mxu0 %v1086
    %1154 = vmatpush.msra.mxu0 %v1083
    %1155 = vmatpush.msra.mxu0 %v1080
    %1156 = vmatpush.msra.mxu0 %v1077
    %1157 = vmatpush.msra.mxu0 %v1074
    %1158 = vmatpush.msra.mxu0 %v1071
    %1159 = vmatmul.f32.gmra.mxu0 %v534
    %v1160 = vpop.f32.mrf.mxu0
    %v1161 = vadd.f32 0.0, %v1160
    %1162 = vmatmul.f32.gmra.mxu0 %v537
    %v1163 = vpop.f32.mrf.mxu0
    %v1164 = vadd.f32 0.0, %v1163
    %1165 = vmatmul.f32.gmra.mxu0 %v540
    %v1166 = vpop.f32.mrf.mxu0
    %v1167 = vadd.f32 0.0, %v1166
    %1168 = vmatmul.f32.gmra.mxu0 %v543
    %v1169 = vpop.f32.mrf.mxu0
    %v1170 = vadd.f32 0.0, %v1169
    %1171 = vmatmul.f32.gmra.mxu0 %v546
    %v1172 = vpop.f32.mrf.mxu0
    %v1173 = vadd.f32 0.0, %v1172
    %1174 = vmatmul.f32.gmra.mxu0 %v549
    %v1175 = vpop.f32.mrf.mxu0
    %v1176 = vadd.f32 0.0, %v1175
    %1177 = vmatmul.f32.gmra.mxu0 %v552
    %v1178 = vpop.f32.mrf.mxu0
    %v1179 = vadd.f32 0.0, %v1178
    %1180 = vmatmul.f32.gmra.mxu0 %v555
    %v1181 = vpop.f32.mrf.mxu0
    %v1182 = vadd.f32 0.0, %v1181
    %1183 = vdwg.mxu0
    %v1184 = vadd.f32 %v1135, %v1161
    %v1185 = vadd.f32 %v1136, %v1164
    %v1186 = vadd.f32 %v1137, %v1167
    %v1187 = vadd.f32 %v1138, %v1170
    %v1188 = vadd.f32 %v1139, %v1173
    %v1189 = vadd.f32 %v1140, %v1176
    %v1190 = vadd.f32 %v1141, %v1179
    %v1191 = vadd.f32 %v1142, %v1182
    %1192 = vst [vmem:[#allocation20] sm:$0xff] %v1184
    %1193 = vst [vmem:[#allocation20 + $0x8] sm:$0xff] %v1185
    %1194 = vst [vmem:[#allocation20 + $0x10] sm:$0xff] %v1186
    %1195 = vst [vmem:[#allocation20 + $0x18] sm:$0xff] %v1187
    %1196 = vst [vmem:[#allocation20 + $0x20] sm:$0xff] %v1188
    %1197 = vst [vmem:[#allocation20 + $0x28] sm:$0xff] %v1189
    %1198 = vst [vmem:[#allocation20 + $0x30] sm:$0xff] %v1190
    %1199 = vst [vmem:[#allocation20 + $0x38] sm:$0xff] %v1191
    // Predicated region
    $region106: #{tpu_custom_call.1} parent=1 // pred_check
      _
    $region107: #{tpu_custom_call.1} parent=1 // pred_check_branch
      %1201 = sbr.rel (0) target = $region109
    $region108: #{tpu_custom_call.1} parent=1 // pred_region
      %1203 = vsyncadd [#allocation4], 0
      %s1204 = sshll.u32 [#allocation20], 4
      %s1205 = int_to_ptr.vmem [resolvable:$true] %s1204
      %s1206 = sshll.u32 %s15, 4
      %s1207 = int_to_ptr.hbm [resolvable:$true] %s1206
      %1212 = dma.vmem_to_hbm [thread:$0]  %s1205, 1024, %s1207, [#allocation4], 128, 128, 8
    $region109: #{tpu_custom_call.1} parent=1 // pred_fallthru
      _
    // Predicated region
    $region110: #{tpu_custom_call.1} parent=1 // pred_check
      _
    $region111: #{tpu_custom_call.1} parent=1 // pred_check_branch
      %1214 = sbr.rel (0) target = $region113
    $region112: #{tpu_custom_call.1} parent=1 // pred_region
      %1216 = dma.done [#allocation4], 1024
    $region113: #{tpu_custom_call.1} parent=1 // pred_fallthru
      _
    %1217 = vsyncpa [#allocation3], 1
    %1218 = vsyncpa [#allocation6], 1
    %1219 = vsyncpa [#allocation9], 1
    %1220 = vsyncpa [#allocation12], 1
    %1221 = vsyncpa [#allocation15], 1
    %1222 = vsyncpa [#allocation18], 1
    %1223 = vsyncpa [#allocation4], 1

</llo_original>
